<compile_context>
chip_gen: v7x
topology: tpu7x:2x2x1
jax: 0.10.0
libtpu: 0.0.40
codegen_flags: <defaults>
</compile_context>

<pallas_src>
import functools

import jax
import jax.numpy as jnp
from jax.experimental import pallas as pl
from jax.experimental.pallas import tpu as pltpu

f32 = jnp.float32
bf16 = jnp.bfloat16


def _round_up(x, m):
    return ((x + m - 1) // m) * m


def _largest_divisor_at_most(n, cap):
    cap = max(1, min(n, cap))
    for d in range(cap, 0, -1):
        if n % d == 0:
            return d
    return 1


def _proj_kernel(h_ref, a_ref, v_ref, wt_ref, wa_ref, wv_ref,
                 tp_ref, ap_ref, vp_ref, ssq_ref):
    # One large-M matmul tile per grid step (TM rows of the flattened B*S
    # token axis); bf16 operands, f32 accumulation.
    t = jnp.dot(h_ref[...].astype(bf16), wt_ref[...],
                preferred_element_type=f32)
    a = jnp.dot(a_ref[...].astype(bf16), wa_ref[...],
                preferred_element_type=f32)
    v = jnp.dot(v_ref[...].astype(bf16), wv_ref[...],
                preferred_element_type=f32)
    tp_ref[...] = t.astype(tp_ref.dtype)
    ap_ref[...] = a.astype(ap_ref.dtype)
    vp_ref[...] = v.astype(vp_ref.dtype)

    # Per-tile sum-of-squares partials, reduced in the wrapper. No serial
    # accumulator -> the grid axis stays "parallel".
    st = jnp.sum(t * t)
    sa = jnp.sum(a * a)
    sv = jnp.sum(v * v)
    row = jax.lax.broadcasted_iota(jnp.int32, (3, 128), 0)
    ssq_ref[0] = jnp.where(row == 0, st, jnp.where(row == 1, sa, sv))


def _fusion_kernel(scal_ref, h_ref, tp_ref, ap_ref, vp_ref,
                   mrow_ref, mcol_ref, wd_ref, bd_ref, g_ref, beta_ref,
                   out_ref, *att_refs):
    # scal = [rsqrt(ssq_t), text_w, audio_w*rsqrt(ssq_a),
    #         visual_w*rsqrt(ssq_v), bias]
    h = h_ref[...]                                  # (Bt, S, H) f32
    hb = h.astype(bf16)

    def relu_gram(x_ref):
        x = x_ref[...]                              # (Bt, S, P) bf16
        g = jnp.einsum("bqp,bkp->bqk", x, x, preferred_element_type=f32)
        return jnp.maximum(g, 0.0)

    # gram(x / c) == gram(x) / c^2: the global sqrt(L2-norm) normalizers are
    # folded into the scalars (no per-element divides on the projections).
    text_att = relu_gram(tp_ref) * scal_ref[0]      # returned text attention
    fusion = (text_att * scal_ref[1]
              + relu_gram(ap_ref) * scal_ref[2]
              + relu_gram(vp_ref) * scal_ref[3]
              + scal_ref[4])

    if att_refs:                                    # static (trace-time) branch
        tatt_ref, f1_ref = att_refs
        tatt_ref[...] = text_att
        f1_ref[...] = jnp.maximum(fusion, 0.0)      # pre-mask ReLU, returned

    # additive mask: -10000 where either the row or the column token is masked
    logits = fusion + jnp.minimum(mrow_ref[...], mcol_ref[...])

    # softmax with deferred normalization (reciprocal on the EUP slot;
    # an (S,H) multiply replaces the (S,S) divide)
    mx = jnp.max(logits, axis=-1, keepdims=True)
    e = jnp.exp(logits - mx)
    r = pl.reciprocal(jnp.sum(e, axis=-1, keepdims=True), approx=True)
    # TODO(synk): training-mode dropout (modality_att_dropout_prob /
    # hidden_dropout_prob) not implemented; eval-mode identity here.
    ctx = jnp.einsum("bqk,bkd->bqd", e.astype(bf16), hb,
                     preferred_element_type=f32)
    fusion_data = ctx * r + h                       # residual add

    x2 = fusion_data.reshape(-1, fusion_data.shape[-1])        # (Bt*S, H)
    dense = jnp.dot(x2.astype(bf16), wd_ref[...],
                    preferred_element_type=f32) + bd_ref[...]

    mu = jnp.mean(dense, axis=-1, keepdims=True)
    var = jnp.mean(jnp.square(dense - mu), axis=-1, keepdims=True)
    y = (dense - mu) * jax.lax.rsqrt(var + 1e-5) * g_ref[...] + beta_ref[...]
    out_ref[...] = y.reshape(out_ref.shape).astype(out_ref.dtype)


def modality_attention(hidden, audio, visual, attention_mask, params,
                       *, return_attentions=True, tm=512,
                       fusion_vmem_budget=12 * 1024 * 1024):
    B, S, H = hidden.shape
    A = audio.shape[-1]
    V = visual.shape[-1]
    P = params["w_t"].shape[0]

    # ---------------- kernel 1: projections over flattened tokens ----------
    BS = B * S
    TM = min(tm, _round_up(BS, 8))
    BS_pad = _round_up(BS, TM)
    n_tiles = BS_pad // TM

    def _flat_pad(x):
        x = x.reshape(BS, x.shape[-1]).astype(f32)
        if BS_pad != BS:
            x = jnp.pad(x, ((0, BS_pad - BS), (0, 0)))   # zero rows: ssq-safe
        return x

    h_flat = _flat_pad(hidden)
    a_flat = _flat_pad(audio)
    v_flat = _flat_pad(visual)

    wt_t = params["w_t"].T.astype(bf16)     # Conv1d(k=1, bias=False) == matmul
    wa_t = params["w_a"].T.astype(bf16)
    wv_t = params["w_v"].T.astype(bf16)

    tproj, aproj, vproj, ssq_part = pl.pallas_call(
        _proj_kernel,
        grid=(n_tiles,),
        in_specs=[
            pl.BlockSpec((TM, H), lambda m: (m, 0)),
            pl.BlockSpec((TM, A), lambda m: (m, 0)),
            pl.BlockSpec((TM, V), lambda m: (m, 0)),
            pl.BlockSpec((H, P), lambda m: (0, 0)),
            pl.BlockSpec((A, P), lambda m: (0, 0)),
            pl.BlockSpec((V, P), lambda m: (0, 0)),
        ],
        out_specs=[
            pl.BlockSpec((TM, P), lambda m: (m, 0)),
            pl.BlockSpec((TM, P), lambda m: (m, 0)),
            pl.BlockSpec((TM, P), lambda m: (m, 0)),
            pl.BlockSpec((1, 3, 128), lambda m: (m, 0, 0)),
        ],
        out_shape=[
            jax.ShapeDtypeStruct((BS_pad, P), bf16),
            jax.ShapeDtypeStruct((BS_pad, P), bf16),
            jax.ShapeDtypeStruct((BS_pad, P), bf16),
            jax.ShapeDtypeStruct((n_tiles, 3, 128), f32),
        ],
        compiler_params=pltpu.CompilerParams(
            dimension_semantics=("parallel",)),
    )(h_flat, a_flat, v_flat, wt_t, wa_t, wv_t)

    # Global (all-batch, all-token) normalizer, as in the reference:
    # weights = sqrt(||proj||_2) = ssq^(1/4)  =>  gram scale = rsqrt(ssq).
    # No epsilon on purpose (matches PyTorch: all-zero modality -> NaN).
    ssq = jnp.sum(ssq_part[:, :, 0], axis=0)                       # (3,)
    inv_t = jax.lax.rsqrt(ssq[0])
    inv_a = jax.lax.rsqrt(ssq[1])
    inv_v = jax.lax.rsqrt(ssq[2])
    scal = jnp.stack([
        inv_t,
        jnp.asarray(params["text_weight"], f32).reshape(()),
        jnp.asarray(params["audio_weight"], f32).reshape(()) * inv_a,
        jnp.asarray(params["visual_weight"], f32).reshape(()) * inv_v,
        jnp.asarray(params["bias"], f32).reshape(()),
    ]).astype(f32)                                                  # (5,)

    def _unflat(x):
        return x[:BS].reshape(B, S, P)

    tproj_b = _unflat(tproj)
    aproj_b = _unflat(aproj)
    vproj_b = _unflat(vproj)

    # ---------------- kernel 2: gram fusion + softmax + dense + LN ---------
    # Reference mask semantics: logical_or(1-mask_i != 0, 1-mask_j != 0)*-1e4
    bad = (1.0 - attention_mask.astype(f32)) != 0.0
    neg = jnp.where(bad, jnp.float32(-10000.0), jnp.float32(0.0))
    neg_row = neg.reshape(B, 1, S)
    neg_col = neg.reshape(B, S, 1)

    wd_t = params["dense_w"].T.astype(bf16)         # Linear: y = x @ W.T + b
    bd = params["dense_b"].reshape(1, H).astype(f32)
    gamma = params["ln_gamma"].reshape(1, H).astype(f32)
    beta = params["ln_beta"].reshape(1, H).astype(f32)

    # batches per step, sized conservatively for v7x's 64 MiB VMEM
    per_batch = 2 * S * H * 4 + 3 * S * P * 2 + 6 * S * S * 4
    bt_cap = max(1, fusion_vmem_budget // (2 * per_batch))
    Bt = _largest_divisor_at_most(B, bt_cap)

    # TODO(synk): for large real-world S/H not multiples of 128, pad output
    # last dims for lane-dense (unmasked) stores and slice in the wrapper.
    out_shapes = [jax.ShapeDtypeStruct((B, S, H), hidden.dtype)]
    out_specs = [pl.BlockSpec((Bt, S, H), lambda b: (b, 0, 0))]
    if return_attentions:
        out_shapes += [jax.ShapeDtypeStruct((B, S, S), f32),
                       jax.ShapeDtypeStruct((B, S, S), f32)]
        out_specs += [pl.BlockSpec((Bt, S, S), lambda b: (b, 0, 0)),
                      pl.BlockSpec((Bt, S, S), lambda b: (b, 0, 0))]

    results = pl.pallas_call(
        _fusion_kernel,
        grid=(B // Bt,),
        in_specs=[
            pl.BlockSpec(memory_space=pltpu.MemorySpace.SMEM),   # scalars (5,)
            pl.BlockSpec((Bt, S, H), lambda b: (b, 0, 0)),       # hidden
            pl.BlockSpec((Bt, S, P), lambda b: (b, 0, 0)),       # text proj
            pl.BlockSpec((Bt, S, P), lambda b: (b, 0, 0)),       # audio proj
            pl.BlockSpec((Bt, S, P), lambda b: (b, 0, 0)),       # visual proj
            pl.BlockSpec((Bt, 1, S), lambda b: (b, 0, 0)),       # additive row mask
            pl.BlockSpec((Bt, S, 1), lambda b: (b, 0, 0)),       # additive col mask
            pl.BlockSpec((H, H), lambda b: (0, 0)),              # dense W^T (bf16)
            pl.BlockSpec((1, H), lambda b: (0, 0)),              # dense bias
            pl.BlockSpec((1, H), lambda b: (0, 0)),              # LN gamma
            pl.BlockSpec((1, H), lambda b: (0, 0)),              # LN beta
        ],
        out_specs=out_specs,
        out_shape=out_shapes,
        compiler_params=pltpu.CompilerParams(
            dimension_semantics=("parallel",)),
    )(scal, hidden.astype(f32), tproj_b, aproj_b, vproj_b,
      neg_row, neg_col, wd_t, bd, gamma, beta)

    if return_attentions:
        return results[0], results[1], results[2]
    return results[0], None, None


if __name__ == "__main__":
    # config: hidden_size=32, projection_size=16, audio_feat_size=12,
    #         visual_feat_size=20; batch=2, seq=8
    B, S, H, A, V, P = 2, 8, 32, 12, 20, 16
    key = jax.random.PRNGKey(0)
    ks = jax.random.split(key, 8)

    hidden = jax.random.normal(ks[0], (B, S, H), f32)
    audio = jax.random.normal(ks[1], (B, S, A), f32)
    visual = jax.random.normal(ks[2], (B, S, V), f32)
    attention_mask = jnp.ones((B, S), f32).at[:, -2:].set(0.0)

    params = {
        "w_t": jax.random.normal(ks[3], (P, H), f32) * 0.1,  # Conv1d(H->P,k=1)
        "w_a": jax.random.normal(ks[4], (P, A), f32) * 0.1,  # Conv1d(A->P,k=1)
        "w_v": jax.random.normal(ks[5], (P, V), f32) * 0.1,  # Conv1d(V->P,k=1)
        "dense_w": jax.random.normal(ks[6], (H, H), f32) * 0.05,
        "dense_b": jax.random.normal(ks[7], (H,), f32) * 0.01,
        "ln_gamma": jnp.ones((H,), f32),
        "ln_beta": jnp.zeros((H,), f32),
        "text_weight": jnp.float32(1.0),
        "audio_weight": jnp.float32(1.0),
        "visual_weight": jnp.float32(1.0),
        "bias": jnp.float32(0.0),
    }

    run = jax.jit(functools.partial(modality_attention))
    hidden_new, text_att, fusion_att1 = run(
        hidden, audio, visual, attention_mask, params)
    jax.block_until_ready((hidden_new, text_att, fusion_att1))

    assert hidden_new.shape == (B, S, H)
    assert text_att.shape == (B, S, S)
    assert fusion_att1.shape == (B, S, S)
    assert bool(jnp.all(jnp.isfinite(hidden_new)))
    print("KERNEL_OK")
</pallas_src>

<mosaic_0001>
module attributes {stable_mosaic.version = 11 : i64} {
  func.func @_proj_kernel(%arg0: i32, %arg1: memref<16x32xf32, #tpu.memory_space<vmem>>, %arg2: memref<16x12xf32, #tpu.memory_space<vmem>>, %arg3: memref<16x20xf32, #tpu.memory_space<vmem>>, %arg4: memref<32x16xbf16, #tpu.memory_space<vmem>>, %arg5: memref<12x16xbf16, #tpu.memory_space<vmem>>, %arg6: memref<20x16xbf16, #tpu.memory_space<vmem>>, %arg7: memref<16x16xbf16, #tpu.memory_space<vmem>>, %arg8: memref<16x16xbf16, #tpu.memory_space<vmem>>, %arg9: memref<16x16xbf16, #tpu.memory_space<vmem>>, %arg10: memref<1x3x128xf32, #tpu.memory_space<vmem>>) attributes {dimension_semantics = [#tpu.dimension_semantics<parallel>], iteration_bounds = array<i64: 1>, scalar_prefetch = 0 : i64, scratch_operands = 0 : i64, tpu.core_type = #tpu.core_type<tc>, window_params = [{transform_indices = @transform_0, window_bounds = array<i64: 16, 32>}, {transform_indices = @transform_1, window_bounds = array<i64: 16, 12>}, {transform_indices = @transform_2, window_bounds = array<i64: 16, 20>}, {pipeline_mode = #tpu.pipeline_mode<synchronous>, transform_indices = @transform_3, window_bounds = array<i64: 32, 16>}, {pipeline_mode = #tpu.pipeline_mode<synchronous>, transform_indices = @transform_4, window_bounds = array<i64: 12, 16>}, {pipeline_mode = #tpu.pipeline_mode<synchronous>, transform_indices = @transform_5, window_bounds = array<i64: 20, 16>}, {transform_indices = @transform_6, window_bounds = array<i64: 16, 16>}, {transform_indices = @transform_7, window_bounds = array<i64: 16, 16>}, {transform_indices = @transform_8, window_bounds = array<i64: 16, 16>}, {transform_indices = @transform_9, window_bounds = array<i64: 1, 3, 128>}]} {
    %c0 = arith.constant 0 : index
    %c0_0 = arith.constant 0 : index
    %0 = vector.load %arg1[%c0, %c0_0] : memref<16x32xf32, #tpu.memory_space<vmem>>, vector<16x32xf32>
    %1 = arith.truncf %0 : vector<16x32xf32> to vector<16x32xbf16>
    %c0_1 = arith.constant 0 : index
    %c0_2 = arith.constant 0 : index
    %2 = vector.load %arg4[%c0_1, %c0_2] : memref<32x16xbf16, #tpu.memory_space<vmem>>, vector<32x16xbf16>
    %cst = arith.constant dense<0.000000e+00> : vector<16x16xf32>
    %3 = tpu.matmul %1, %2, %cst {dimension_numbers = #tpu.dot_dimension_numbers<[1], [0], [0], [1], [0, 0, 1, 1], [], []>} : vector<16x32xbf16>, vector<32x16xbf16>, vector<16x16xf32> -> vector<16x16xf32>
    %c0_3 = arith.constant 0 : index
    %c0_4 = arith.constant 0 : index
    %4 = vector.load %arg2[%c0_3, %c0_4] : memref<16x12xf32, #tpu.memory_space<vmem>>, vector<16x12xf32>
    %5 = arith.truncf %4 : vector<16x12xf32> to vector<16x12xbf16>
    %c0_5 = arith.constant 0 : index
    %c0_6 = arith.constant 0 : index
    %6 = vector.load %arg5[%c0_5, %c0_6] : memref<12x16xbf16, #tpu.memory_space<vmem>>, vector<12x16xbf16>
    %cst_7 = arith.constant dense<0.000000e+00> : vector<16x16xf32>
    %7 = tpu.matmul %5, %6, %cst_7 {dimension_numbers = #tpu.dot_dimension_numbers<[1], [0], [0], [1], [0, 0, 1, 1], [], []>} : vector<16x12xbf16>, vector<12x16xbf16>, vector<16x16xf32> -> vector<16x16xf32>
    %c0_8 = arith.constant 0 : index
    %c0_9 = arith.constant 0 : index
    %8 = vector.load %arg3[%c0_8, %c0_9] : memref<16x20xf32, #tpu.memory_space<vmem>>, vector<16x20xf32>
    %9 = arith.truncf %8 : vector<16x20xf32> to vector<16x20xbf16>
    %c0_10 = arith.constant 0 : index
    %c0_11 = arith.constant 0 : index
    %10 = vector.load %arg6[%c0_10, %c0_11] : memref<20x16xbf16, #tpu.memory_space<vmem>>, vector<20x16xbf16>
    %cst_12 = arith.constant dense<0.000000e+00> : vector<16x16xf32>
    %11 = tpu.matmul %9, %10, %cst_12 {dimension_numbers = #tpu.dot_dimension_numbers<[1], [0], [0], [1], [0, 0, 1, 1], [], []>} : vector<16x20xbf16>, vector<20x16xbf16>, vector<16x16xf32> -> vector<16x16xf32>
    %12 = arith.truncf %3 : vector<16x16xf32> to vector<16x16xbf16>
    %c0_13 = arith.constant 0 : index
    %c0_14 = arith.constant 0 : index
    %13 = vector.load %arg7[%c0_13, %c0_14] : memref<16x16xbf16, #tpu.memory_space<vmem>>, vector<16x16xbf16>
    tpu.vector_store %arg7[%c0_13, %c0_14], %12 {strides = array<i32>} : memref<16x16xbf16, #tpu.memory_space<vmem>>, vector<16x16xbf16>,
    %14 = arith.truncf %7 : vector<16x16xf32> to vector<16x16xbf16>
    %c0_15 = arith.constant 0 : index
    %c0_16 = arith.constant 0 : index
    %15 = vector.load %arg8[%c0_15, %c0_16] : memref<16x16xbf16, #tpu.memory_space<vmem>>, vector<16x16xbf16>
    tpu.vector_store %arg8[%c0_15, %c0_16], %14 {strides = array<i32>} : memref<16x16xbf16, #tpu.memory_space<vmem>>, vector<16x16xbf16>,
    %16 = arith.truncf %11 : vector<16x16xf32> to vector<16x16xbf16>
    %c0_17 = arith.constant 0 : index
    %c0_18 = arith.constant 0 : index
    %17 = vector.load %arg9[%c0_17, %c0_18] : memref<16x16xbf16, #tpu.memory_space<vmem>>, vector<16x16xbf16>
    tpu.vector_store %arg9[%c0_17, %c0_18], %16 {strides = array<i32>} : memref<16x16xbf16, #tpu.memory_space<vmem>>, vector<16x16xbf16>,
    %18 = arith.mulf %3, %3 : vector<16x16xf32>
    %19 = vector.shape_cast %18 : vector<16x16xf32> to vector<1x16x16xf32>
    %cst_19 = arith.constant dense<0.000000e+00> : vector<1xf32>
    %20 = vector.multi_reduction <add>, %19, %cst_19 [1, 2] : vector<1x16x16xf32> to vector<1xf32>
    %21 = vector.shape_cast %20 : vector<1xf32> to vector<1x1x1xf32>
    %22 = vector.extract %21[0, 0, 0] : f32 from vector<1x1x1xf32>
    %23 = arith.mulf %7, %7 : vector<16x16xf32>
    %24 = vector.shape_cast %23 : vector<16x16xf32> to vector<1x16x16xf32>
    %cst_20 = arith.constant dense<0.000000e+00> : vector<1xf32>
    %25 = vector.multi_reduction <add>, %24, %cst_20 [1, 2] : vector<1x16x16xf32> to vector<1xf32>
    %26 = vector.shape_cast %25 : vector<1xf32> to vector<1x1x1xf32>
    %27 = vector.extract %26[0, 0, 0] : f32 from vector<1x1x1xf32>
    %28 = arith.mulf %11, %11 : vector<16x16xf32>
    %29 = vector.shape_cast %28 : vector<16x16xf32> to vector<1x16x16xf32>
    %cst_21 = arith.constant dense<0.000000e+00> : vector<1xf32>
    %30 = vector.multi_reduction <add>, %29, %cst_21 [1, 2] : vector<1x16x16xf32> to vector<1xf32>
    %31 = vector.shape_cast %30 : vector<1xf32> to vector<1x1x1xf32>
    %32 = vector.extract %31[0, 0, 0] : f32 from vector<1x1x1xf32>
    %33 = tpu.iota {dimensions = array<i32: 0>} : vector<3x128xi32>
    %c0_i32 = arith.constant 0 : i32
    %34 = vector.broadcast %c0_i32 : i32 to vector<3x128xi32>
    %35 = arith.cmpi eq, %33, %34 : vector<3x128xi32>
    %c1_i32 = arith.constant 1 : i32
    %36 = vector.broadcast %c1_i32 : i32 to vector<3x128xi32>
    %37 = arith.cmpi eq, %33, %36 : vector<3x128xi32>
    %38 = vector.broadcast %27 : f32 to vector<3x128xf32>
    %39 = vector.broadcast %32 : f32 to vector<3x128xf32>
    %40 = arith.select %37, %38, %39 : vector<3x128xi1>, vector<3x128xf32>
    %41 = vector.broadcast %22 : f32 to vector<3x128xf32>
    %42 = arith.select %35, %41, %40 : vector<3x128xi1>, vector<3x128xf32>
    %c0_22 = arith.constant 0 : index
    %c0_23 = arith.constant 0 : index
    %c0_24 = arith.constant 0 : index
    %43 = vector.load %arg10[%c0_22, %c0_23, %c0_24] : memref<1x3x128xf32, #tpu.memory_space<vmem>>, vector<1x3x128xf32>
    %44 = vector.shape_cast %43 : vector<1x3x128xf32> to vector<3x128xf32>
    %45 = vector.shape_cast %42 : vector<3x128xf32> to vector<1x3x128xf32>
    tpu.vector_store %arg10[%c0_22, %c0_23, %c0_24], %45 {strides = array<i32>} : memref<1x3x128xf32, #tpu.memory_space<vmem>>, vector<1x3x128xf32>,
    return
  }
  func.func @transform_0(%arg0: i32) -> (i32, i32) {
    %c0_i32 = arith.constant 0 : i32
    %c0_i32_0 = arith.constant 0 : i32
    return %arg0, %c0_i32 : i32, i32
  }
  func.func @transform_1(%arg0: i32) -> (i32, i32) {
    %c0_i32 = arith.constant 0 : i32
    %c0_i32_0 = arith.constant 0 : i32
    return %arg0, %c0_i32 : i32, i32
  }
  func.func @transform_2(%arg0: i32) -> (i32, i32) {
    %c0_i32 = arith.constant 0 : i32
    %c0_i32_0 = arith.constant 0 : i32
    return %arg0, %c0_i32 : i32, i32
  }
  func.func @transform_3(%arg0: i32) -> (i32, i32) {
    %c0_i32 = arith.constant 0 : i32
    %c0_i32_0 = arith.constant 0 : i32
    %c0_i32_1 = arith.constant 0 : i32
    return %c0_i32, %c0_i32_0 : i32, i32
  }
  func.func @transform_4(%arg0: i32) -> (i32, i32) {
    %c0_i32 = arith.constant 0 : i32
    %c0_i32_0 = arith.constant 0 : i32
    %c0_i32_1 = arith.constant 0 : i32
    return %c0_i32, %c0_i32_0 : i32, i32
  }
  func.func @transform_5(%arg0: i32) -> (i32, i32) {
    %c0_i32 = arith.constant 0 : i32
    %c0_i32_0 = arith.constant 0 : i32
    %c0_i32_1 = arith.constant 0 : i32
    return %c0_i32, %c0_i32_0 : i32, i32
  }
  func.func @transform_6(%arg0: i32) -> (i32, i32) {
    %c0_i32 = arith.constant 0 : i32
    %c0_i32_0 = arith.constant 0 : i32
    return %arg0, %c0_i32 : i32, i32
  }
  func.func @transform_7(%arg0: i32) -> (i32, i32) {
    %c0_i32 = arith.constant 0 : i32
    %c0_i32_0 = arith.constant 0 : i32
    return %arg0, %c0_i32 : i32, i32
  }
  func.func @transform_8(%arg0: i32) -> (i32, i32) {
    %c0_i32 = arith.constant 0 : i32
    %c0_i32_0 = arith.constant 0 : i32
    return %arg0, %c0_i32 : i32, i32
  }
  func.func @transform_9(%arg0: i32) -> (i32, i32, i32) {
    %c0_i32 = arith.constant 0 : i32
    %c0_i32_0 = arith.constant 0 : i32
    %c0_i32_1 = arith.constant 0 : i32
    return %arg0, %c0_i32, %c0_i32_0 : i32, i32, i32
  }
}

module attributes {stable_mosaic.version = 11 : i64} {
  func.func @_fusion_kernel(%arg0: i32, %arg1: memref<5xf32, #tpu.memory_space<smem>>, %arg2: memref<2x8x32xf32, #tpu.memory_space<vmem>>, %arg3: memref<2x8x16xbf16, #tpu.memory_space<vmem>>, %arg4: memref<2x8x16xbf16, #tpu.memory_space<vmem>>, %arg5: memref<2x8x16xbf16, #tpu.memory_space<vmem>>, %arg6: memref<2x1x8xf32, #tpu.memory_space<vmem>>, %arg7: memref<2x8x1xf32, #tpu.memory_space<vmem>>, %arg8: memref<32x32xbf16, #tpu.memory_space<vmem>>, %arg9: memref<1x32xf32, #tpu.memory_space<vmem>>, %arg10: memref<1x32xf32, #tpu.memory_space<vmem>>, %arg11: memref<1x32xf32, #tpu.memory_space<vmem>>, %arg12: memref<2x8x32xf32, #tpu.memory_space<vmem>>, %arg13: memref<2x8x8xf32, #tpu.memory_space<vmem>>, %arg14: memref<2x8x8xf32, #tpu.memory_space<vmem>>) attributes {dimension_semantics = [#tpu.dimension_semantics<parallel>], iteration_bounds = array<i64: 1>, scalar_prefetch = 0 : i64, scratch_operands = 0 : i64, tpu.core_type = #tpu.core_type<tc>, window_params = [{transform_indices = @transform_0, window_bounds = array<i64: 5>}, {transform_indices = @transform_1, window_bounds = array<i64: 2, 8, 32>}, {transform_indices = @transform_2, window_bounds = array<i64: 2, 8, 16>}, {transform_indices = @transform_3, window_bounds = array<i64: 2, 8, 16>}, {transform_indices = @transform_4, window_bounds = array<i64: 2, 8, 16>}, {transform_indices = @transform_5, window_bounds = array<i64: 2, 1, 8>}, {transform_indices = @transform_6, window_bounds = array<i64: 2, 8, 1>}, {pipeline_mode = #tpu.pipeline_mode<synchronous>, transform_indices = @transform_7, window_bounds = array<i64: 32, 32>}, {pipeline_mode = #tpu.pipeline_mode<synchronous>, transform_indices = @transform_8, window_bounds = array<i64: 1, 32>}, {pipeline_mode = #tpu.pipeline_mode<synchronous>, transform_indices = @transform_9, window_bounds = array<i64: 1, 32>}, {pipeline_mode = #tpu.pipeline_mode<synchronous>, transform_indices = @transform_10, window_bounds = array<i64: 1, 32>}, {transform_indices = @transform_11, window_bounds = array<i64: 2, 8, 32>}, {transform_indices = @transform_12, window_bounds = array<i64: 2, 8, 8>}, {transform_indices = @transform_13, window_bounds = array<i64: 2, 8, 8>}]} {
    %c0 = arith.constant 0 : index
    %c0_0 = arith.constant 0 : index
    %c0_1 = arith.constant 0 : index
    %0 = vector.load %arg2[%c0, %c0_0, %c0_1] : memref<2x8x32xf32, #tpu.memory_space<vmem>>, vector<2x8x32xf32>
    %1 = arith.truncf %0 : vector<2x8x32xf32> to vector<2x8x32xbf16>
    %c0_2 = arith.constant 0 : index
    %c0_3 = arith.constant 0 : index
    %c0_4 = arith.constant 0 : index
    %2 = vector.load %arg3[%c0_2, %c0_3, %c0_4] : memref<2x8x16xbf16, #tpu.memory_space<vmem>>, vector<2x8x16xbf16>
    "tpu.trace_start"() <{level = 10 : i32, message = "bqp,bkp->bqk"}> : () -> ()
    %cst = arith.constant dense<0.000000e+00> : vector<2x8x8xf32>
    %3 = tpu.matmul %2, %2, %cst {dimension_numbers = #tpu.dot_dimension_numbers<[2], [2], [1], [1], [0, 0, 0, 1, 1, 1], [0], [0]>} : vector<2x8x16xbf16>, vector<2x8x16xbf16>, vector<2x8x8xf32> -> vector<2x8x8xf32>
    "tpu.trace_stop"() : () -> ()
    %cst_5 = arith.constant 0.000000e+00 : f32
    %4 = vector.broadcast %cst_5 : f32 to vector<2x8x8xf32>
    %5 = arith.maximumf %3, %4 : vector<2x8x8xf32>
    %c0_6 = arith.constant 0 : index
    %6 = memref.load %arg1[%c0_6] : memref<5xf32, #tpu.memory_space<smem>>
    %7 = vector.broadcast %6 : f32 to vector<2x8x8xf32>
    %8 = arith.mulf %5, %7 : vector<2x8x8xf32>
    %c1 = arith.constant 1 : index
    %9 = memref.load %arg1[%c1] : memref<5xf32, #tpu.memory_space<smem>>
    %10 = vector.broadcast %9 : f32 to vector<2x8x8xf32>
    %11 = arith.mulf %8, %10 : vector<2x8x8xf32>
    %c0_7 = arith.constant 0 : index
    %c0_8 = arith.constant 0 : index
    %c0_9 = arith.constant 0 : index
    %12 = vector.load %arg4[%c0_7, %c0_8, %c0_9] : memref<2x8x16xbf16, #tpu.memory_space<vmem>>, vector<2x8x16xbf16>
    "tpu.trace_start"() <{level = 10 : i32, message = "bqp,bkp->bqk"}> : () -> ()
    %cst_10 = arith.constant dense<0.000000e+00> : vector<2x8x8xf32>
    %13 = tpu.matmul %12, %12, %cst_10 {dimension_numbers = #tpu.dot_dimension_numbers<[2], [2], [1], [1], [0, 0, 0, 1, 1, 1], [0], [0]>} : vector<2x8x16xbf16>, vector<2x8x16xbf16>, vector<2x8x8xf32> -> vector<2x8x8xf32>
    "tpu.trace_stop"() : () -> ()
    %cst_11 = arith.constant 0.000000e+00 : f32
    %14 = vector.broadcast %cst_11 : f32 to vector<2x8x8xf32>
    %15 = arith.maximumf %13, %14 : vector<2x8x8xf32>
    %c2 = arith.constant 2 : index
    %16 = memref.load %arg1[%c2] : memref<5xf32, #tpu.memory_space<smem>>
    %17 = vector.broadcast %16 : f32 to vector<2x8x8xf32>
    %18 = arith.mulf %15, %17 : vector<2x8x8xf32>
    %19 = arith.addf %11, %18 : vector<2x8x8xf32>
    %c0_12 = arith.constant 0 : index
    %c0_13 = arith.constant 0 : index
    %c0_14 = arith.constant 0 : index
    %20 = vector.load %arg5[%c0_12, %c0_13, %c0_14] : memref<2x8x16xbf16, #tpu.memory_space<vmem>>, vector<2x8x16xbf16>
    "tpu.trace_start"() <{level = 10 : i32, message = "bqp,bkp->bqk"}> : () -> ()
    %cst_15 = arith.constant dense<0.000000e+00> : vector<2x8x8xf32>
    %21 = tpu.matmul %20, %20, %cst_15 {dimension_numbers = #tpu.dot_dimension_numbers<[2], [2], [1], [1], [0, 0, 0, 1, 1, 1], [0], [0]>} : vector<2x8x16xbf16>, vector<2x8x16xbf16>, vector<2x8x8xf32> -> vector<2x8x8xf32>
    "tpu.trace_stop"() : () -> ()
    %cst_16 = arith.constant 0.000000e+00 : f32
    %22 = vector.broadcast %cst_16 : f32 to vector<2x8x8xf32>
    %23 = arith.maximumf %21, %22 : vector<2x8x8xf32>
    %c3 = arith.constant 3 : index
    %24 = memref.load %arg1[%c3] : memref<5xf32, #tpu.memory_space<smem>>
    %25 = vector.broadcast %24 : f32 to vector<2x8x8xf32>
    %26 = arith.mulf %23, %25 : vector<2x8x8xf32>
    %27 = arith.addf %19, %26 : vector<2x8x8xf32>
    %c4 = arith.constant 4 : index
    %28 = memref.load %arg1[%c4] : memref<5xf32, #tpu.memory_space<smem>>
    %29 = vector.broadcast %28 : f32 to vector<2x8x8xf32>
    %30 = arith.addf %27, %29 : vector<2x8x8xf32>
    %c0_17 = arith.constant 0 : index
    %c0_18 = arith.constant 0 : index
    %c0_19 = arith.constant 0 : index
    %31 = vector.load %arg13[%c0_17, %c0_18, %c0_19] : memref<2x8x8xf32, #tpu.memory_space<vmem>>, vector<2x8x8xf32>
    tpu.vector_store %arg13[%c0_17, %c0_18, %c0_19], %8 {strides = array<i32>} : memref<2x8x8xf32, #tpu.memory_space<vmem>>, vector<2x8x8xf32>,
    %cst_20 = arith.constant 0.000000e+00 : f32
    %32 = vector.broadcast %cst_20 : f32 to vector<2x8x8xf32>
    %33 = arith.maximumf %30, %32 : vector<2x8x8xf32>
    %c0_21 = arith.constant 0 : index
    %c0_22 = arith.constant 0 : index
    %c0_23 = arith.constant 0 : index
    %34 = vector.load %arg14[%c0_21, %c0_22, %c0_23] : memref<2x8x8xf32, #tpu.memory_space<vmem>>, vector<2x8x8xf32>
    tpu.vector_store %arg14[%c0_21, %c0_22, %c0_23], %33 {strides = array<i32>} : memref<2x8x8xf32, #tpu.memory_space<vmem>>, vector<2x8x8xf32>,
    %c0_24 = arith.constant 0 : index
    %c0_25 = arith.constant 0 : index
    %c0_26 = arith.constant 0 : index
    %35 = vector.load %arg6[%c0_24, %c0_25, %c0_26] : memref<2x1x8xf32, #tpu.memory_space<vmem>>, vector<2x1x8xf32>
    %c0_27 = arith.constant 0 : index
    %c0_28 = arith.constant 0 : index
    %c0_29 = arith.constant 0 : index
    %36 = vector.load %arg7[%c0_27, %c0_28, %c0_29] : memref<2x8x1xf32, #tpu.memory_space<vmem>>, vector<2x8x1xf32>
    %37 = vector.broadcast %35 : vector<2x1x8xf32> to vector<2x8x8xf32>
    %38 = vector.broadcast %36 : vector<2x8x1xf32> to vector<2x8x8xf32>
    %39 = arith.minimumf %37, %38 : vector<2x8x8xf32>
    %40 = arith.addf %30, %39 : vector<2x8x8xf32>
    %cst_30 = arith.constant dense<0xFF800000> : vector<2x8xf32>
    %41 = vector.multi_reduction <maximumf>, %40, %cst_30 [2] : vector<2x8x8xf32> to vector<2x8xf32>
    %42 = vector.shape_cast %41 : vector<2x8xf32> to vector<2x8x1xf32>
    %43 = vector.broadcast %42 : vector<2x8x1xf32> to vector<2x8x8xf32>
    %44 = arith.subf %40, %43 : vector<2x8x8xf32>
    %45 = math.exp %44 : vector<2x8x8xf32>
    %cst_31 = arith.constant dense<0.000000e+00> : vector<2x8xf32>
    %46 = vector.multi_reduction <add>, %45, %cst_31 [2] : vector<2x8x8xf32> to vector<2x8xf32>
    %47 = vector.shape_cast %46 : vector<2x8xf32> to vector<2x8x1xf32>
    %48 = tpu.reciprocal %47 {approx = true} : vector<2x8x1xf32> -> vector<2x8x1xf32>
    %49 = arith.truncf %45 : vector<2x8x8xf32> to vector<2x8x8xbf16>
    "tpu.trace_start"() <{level = 10 : i32, message = "bqk,bkd->bqd"}> : () -> ()
    %cst_32 = arith.constant dense<0.000000e+00> : vector<2x8x32xf32>
    %50 = tpu.matmul %49, %1, %cst_32 {dimension_numbers = #tpu.dot_dimension_numbers<[2], [1], [1], [2], [0, 0, 0, 1, 1, 2], [0], [0]>} : vector<2x8x8xbf16>, vector<2x8x32xbf16>, vector<2x8x32xf32> -> vector<2x8x32xf32>
    "tpu.trace_stop"() : () -> ()
    %51 = vector.broadcast %48 : vector<2x8x1xf32> to vector<2x8x32xf32>
    %52 = arith.mulf %50, %51 : vector<2x8x32xf32>
    %53 = arith.addf %52, %0 : vector<2x8x32xf32>
    %54 = vector.shape_cast %53 : vector<2x8x32xf32> to vector<16x32xf32>
    %55 = arith.truncf %54 : vector<16x32xf32> to vector<16x32xbf16>
    %c0_33 = arith.constant 0 : index
    %c0_34 = arith.constant 0 : index
    %56 = vector.load %arg8[%c0_33, %c0_34] : memref<32x32xbf16, #tpu.memory_space<vmem>>, vector<32x32xbf16>
    %cst_35 = arith.constant dense<0.000000e+00> : vector<16x32xf32>
    %57 = tpu.matmul %55, %56, %cst_35 {dimension_numbers = #tpu.dot_dimension_numbers<[1], [0], [0], [1], [0, 0, 1, 1], [], []>} : vector<16x32xbf16>, vector<32x32xbf16>, vector<16x32xf32> -> vector<16x32xf32>
    %c0_36 = arith.constant 0 : index
    %c0_37 = arith.constant 0 : index
    %58 = vector.load %arg9[%c0_36, %c0_37] : memref<1x32xf32, #tpu.memory_space<vmem>>, vector<1x32xf32>
    %59 = vector.broadcast %58 : vector<1x32xf32> to vector<16x32xf32>
    %60 = arith.addf %57, %59 : vector<16x32xf32>
    %cst_38 = arith.constant dense<0.000000e+00> : vector<16xf32>
    %61 = vector.multi_reduction <add>, %60, %cst_38 [1] : vector<16x32xf32> to vector<16xf32>
    %62 = vector.shape_cast %61 : vector<16xf32> to vector<16x1xf32>
    %cst_39 = arith.constant 3.200000e+01 : f32
    %63 = vector.broadcast %cst_39 : f32 to vector<16x1xf32>
    %64 = arith.divf %62, %63 : vector<16x1xf32>
    %65 = vector.broadcast %64 : vector<16x1xf32> to vector<16x32xf32>
    %66 = arith.subf %60, %65 : vector<16x32xf32>
    %67 = arith.mulf %66, %66 : vector<16x32xf32>
    %cst_40 = arith.constant dense<0.000000e+00> : vector<16xf32>
    %68 = vector.multi_reduction <add>, %67, %cst_40 [1] : vector<16x32xf32> to vector<16xf32>
    %69 = vector.shape_cast %68 : vector<16xf32> to vector<16x1xf32>
    %cst_41 = arith.constant 3.200000e+01 : f32
    %70 = vector.broadcast %cst_41 : f32 to vector<16x1xf32>
    %71 = arith.divf %69, %70 : vector<16x1xf32>
    %72 = vector.broadcast %64 : vector<16x1xf32> to vector<16x32xf32>
    %73 = arith.subf %60, %72 : vector<16x32xf32>
    %cst_42 = arith.constant 9.99999974E-6 : f32
    %74 = vector.broadcast %cst_42 : f32 to vector<16x1xf32>
    %75 = arith.addf %71, %74 : vector<16x1xf32>
    %76 = math.rsqrt %75 : vector<16x1xf32>
    %77 = vector.broadcast %76 : vector<16x1xf32> to vector<16x32xf32>
    %78 = arith.mulf %73, %77 : vector<16x32xf32>
    %c0_43 = arith.constant 0 : index
    %c0_44 = arith.constant 0 : index
    %79 = vector.load %arg10[%c0_43, %c0_44] : memref<1x32xf32, #tpu.memory_space<vmem>>, vector<1x32xf32>
    %80 = vector.broadcast %79 : vector<1x32xf32> to vector<16x32xf32>
    %81 = arith.mulf %78, %80 : vector<16x32xf32>
    %c0_45 = arith.constant 0 : index
    %c0_46 = arith.constant 0 : index
    %82 = vector.load %arg11[%c0_45, %c0_46] : memref<1x32xf32, #tpu.memory_space<vmem>>, vector<1x32xf32>
    %83 = vector.broadcast %82 : vector<1x32xf32> to vector<16x32xf32>
    %84 = arith.addf %81, %83 : vector<16x32xf32>
    %85 = vector.shape_cast %84 : vector<16x32xf32> to vector<2x8x32xf32>
    %c0_47 = arith.constant 0 : index
    %c0_48 = arith.constant 0 : index
    %c0_49 = arith.constant 0 : index
    %86 = vector.load %arg12[%c0_47, %c0_48, %c0_49] : memref<2x8x32xf32, #tpu.memory_space<vmem>>, vector<2x8x32xf32>
    tpu.vector_store %arg12[%c0_47, %c0_48, %c0_49], %85 {strides = array<i32>} : memref<2x8x32xf32, #tpu.memory_space<vmem>>, vector<2x8x32xf32>,
    return
  }
  func.func @transform_0(%arg0: i32) -> i32 {
    %c0_i32 = arith.constant 0 : i32
    %c0_i32_0 = arith.constant 0 : i32
    return %c0_i32 : i32
  }
  func.func @transform_1(%arg0: i32) -> (i32, i32, i32) {
    %c0_i32 = arith.constant 0 : i32
    %c0_i32_0 = arith.constant 0 : i32
    %c0_i32_1 = arith.constant 0 : i32
    return %arg0, %c0_i32, %c0_i32_0 : i32, i32, i32
  }
  func.func @transform_2(%arg0: i32) -> (i32, i32, i32) {
    %c0_i32 = arith.constant 0 : i32
    %c0_i32_0 = arith.constant 0 : i32
    %c0_i32_1 = arith.constant 0 : i32
    return %arg0, %c0_i32, %c0_i32_0 : i32, i32, i32
  }
  func.func @transform_3(%arg0: i32) -> (i32, i32, i32) {
    %c0_i32 = arith.constant 0 : i32
    %c0_i32_0 = arith.constant 0 : i32
    %c0_i32_1 = arith.constant 0 : i32
    return %arg0, %c0_i32, %c0_i32_0 : i32, i32, i32
  }
  func.func @transform_4(%arg0: i32) -> (i32, i32, i32) {
    %c0_i32 = arith.constant 0 : i32
    %c0_i32_0 = arith.constant 0 : i32
    %c0_i32_1 = arith.constant 0 : i32
    return %arg0, %c0_i32, %c0_i32_0 : i32, i32, i32
  }
  func.func @transform_5(%arg0: i32) -> (i32, i32, i32) {
    %c0_i32 = arith.constant 0 : i32
    %c0_i32_0 = arith.constant 0 : i32
    %c0_i32_1 = arith.constant 0 : i32
    return %arg0, %c0_i32, %c0_i32_0 : i32, i32, i32
  }
  func.func @transform_6(%arg0: i32) -> (i32, i32, i32) {
    %c0_i32 = arith.constant 0 : i32
    %c0_i32_0 = arith.constant 0 : i32
    %c0_i32_1 = arith.constant 0 : i32
    return %arg0, %c0_i32, %c0_i32_0 : i32, i32, i32
  }
  func.func @transform_7(%arg0: i32) -> (i32, i32) {
    %c0_i32 = arith.constant 0 : i32
    %c0_i32_0 = arith.constant 0 : i32
    %c0_i32_1 = arith.constant 0 : i32
    return %c0_i32, %c0_i32_0 : i32, i32
  }
  func.func @transform_8(%arg0: i32) -> (i32, i32) {
    %c0_i32 = arith.constant 0 : i32
    %c0_i32_0 = arith.constant 0 : i32
    %c0_i32_1 = arith.constant 0 : i32
    return %c0_i32, %c0_i32_0 : i32, i32
  }
  func.func @transform_9(%arg0: i32) -> (i32, i32) {
    %c0_i32 = arith.constant 0 : i32
    %c0_i32_0 = arith.constant 0 : i32
    %c0_i32_1 = arith.constant 0 : i32
    return %c0_i32, %c0_i32_0 : i32, i32
  }
  func.func @transform_10(%arg0: i32) -> (i32, i32) {
    %c0_i32 = arith.constant 0 : i32
    %c0_i32_0 = arith.constant 0 : i32
    %c0_i32_1 = arith.constant 0 : i32
    return %c0_i32, %c0_i32_0 : i32, i32
  }
  func.func @transform_11(%arg0: i32) -> (i32, i32, i32) {
    %c0_i32 = arith.constant 0 : i32
    %c0_i32_0 = arith.constant 0 : i32
    %c0_i32_1 = arith.constant 0 : i32
    return %arg0, %c0_i32, %c0_i32_0 : i32, i32, i32
  }
  func.func @transform_12(%arg0: i32) -> (i32, i32, i32) {
    %c0_i32 = arith.constant 0 : i32
    %c0_i32_0 = arith.constant 0 : i32
    %c0_i32_1 = arith.constant 0 : i32
    return %arg0, %c0_i32, %c0_i32_0 : i32, i32, i32
  }
  func.func @transform_13(%arg0: i32) -> (i32, i32, i32) {
    %c0_i32 = arith.constant 0 : i32
    %c0_i32_0 = arith.constant 0 : i32
    %c0_i32_1 = arith.constant 0 : i32
    return %arg0, %c0_i32, %c0_i32_0 : i32, i32, i32
  }
}

</mosaic_0001>

<llo_original>
// kernel: modality_attention.2
$region0: #{modality_attention.2}
  #allocation0 [shape = 'u32[]', space=smem, size = 0x4, offset = 0x4, fixed_abs, tag = 'smem constant byte address 0x4 - core index']
  #allocation1 [shape = 'u32[144,128]{1,0:T(1,128)}', space=vmem, size = 0x12000, scoped, tag = 'internal scratch']
  %s0 = inlined_call_operand.vmem [shape: f32[16,32], index: 0, kind: input, shape index: {}]
  %s1 = inlined_call_operand.vmem [shape: f32[16,12], index: 1, kind: input, shape index: {}]
  %s2 = inlined_call_operand.vmem [shape: f32[16,20], index: 2, kind: input, shape index: {}]
  %s3 = inlined_call_operand.vmem [shape: bf16[32,16], index: 3, kind: input, shape index: {}]
  %s4 = inlined_call_operand.vmem [shape: bf16[12,16], index: 4, kind: input, shape index: {}]
  %s5 = inlined_call_operand.vmem [shape: bf16[20,16], index: 5, kind: input, shape index: {}]
  %s6 = inlined_call_operand.vmem [shape: bf16[16,16], index: 6, kind: output, shape index: {0}]
  %s7 = inlined_call_operand.vmem [shape: bf16[16,16], index: 7, kind: output, shape index: {1}]
  %s8 = inlined_call_operand.vmem [shape: bf16[16,16], index: 8, kind: output, shape index: {2}]
  %s9 = inlined_call_operand.vmem [shape: f32[1,3,128], index: 9, kind: output, shape index: {3}]
  %10 = xla_tuple %s6, %s7, %s8, %s9
  %s11 = sld [smem:[#allocation0]]
  $region58: #{modality_attention.2} parent=0
    _
  %s13 = ssub.s32 1, %s11
  %s14 = scalar_select 0, %s13, %s11
  // Predicated region
  $region2: #{modality_attention.2} parent=0 // pred_check
    _
  $region3: #{modality_attention.2} parent=0 // pred_check_branch
    %16 = sbr.rel (0) target = $region5
  $region4: #{modality_attention.2} parent=0 // pred_region
    _
  $region5: #{modality_attention.2} parent=0 // pred_fallthru
    _
  // Predicated region
  $region6: #{modality_attention.2} parent=0 // pred_check
    _
  $region7: #{modality_attention.2} parent=0 // pred_check_branch
    %18 = sbr.rel (0) target = $region9
  $region8: #{modality_attention.2} parent=0 // pred_region
    _
  $region9: #{modality_attention.2} parent=0 // pred_fallthru
    _
  // Predicated region
  $region10: #{modality_attention.2} parent=0 // pred_check
    _
  $region11: #{modality_attention.2} parent=0 // pred_check_branch
    %20 = sbr.rel (0) target = $region13
  $region12: #{modality_attention.2} parent=0 // pred_region
    _
  $region13: #{modality_attention.2} parent=0 // pred_fallthru
    _
  // Predicated region
  $region14: #{modality_attention.2} parent=0 // pred_check
    _
  $region15: #{modality_attention.2} parent=0 // pred_check_branch
    %22 = sbr.rel (0) target = $region17
  $region16: #{modality_attention.2} parent=0 // pred_region
    _
  $region17: #{modality_attention.2} parent=0 // pred_fallthru
    _
  // Predicated region
  $region18: #{modality_attention.2} parent=0 // pred_check
    _
  $region19: #{modality_attention.2} parent=0 // pred_check_branch
    %24 = sbr.rel (0) target = $region21
  $region20: #{modality_attention.2} parent=0 // pred_region
    _
  $region21: #{modality_attention.2} parent=0 // pred_fallthru
    _
  // Predicated region
  $region22: #{modality_attention.2} parent=0 // pred_check
    _
  $region23: #{modality_attention.2} parent=0 // pred_check_branch
    %26 = sbr.rel (0) target = $region25
  $region24: #{modality_attention.2} parent=0 // pred_region
    _
  $region25: #{modality_attention.2} parent=0 // pred_fallthru
    _
  %v28 = vld [vmem:[%s0] sm:$0xff]
  %v29 = vld [vmem:[%s0 + $0x8] sm:$0xff]
  %v30 = vpack.c.bf16 %v29, %v28
  %v31 = vld [vmem:[%s3] sm:$0xf]
  %v32 = vld [vmem:[%s3 + $0x4] sm:$0xf]
  %v33 = vld [vmem:[%s3 + $0x8] sm:$0xf]
  %v34 = vld [vmem:[%s3 + $0xc] sm:$0xf]
  %v39 = vunpack.c.l.b16 %v31
  %v40 = vunpack.c.l.b16 %v32
  %v41 = vunpack.c.l.b16 %v33
  %v42 = vunpack.c.l.b16 %v34
  %v43 = vpack.c.b16 %v40, %v39
  %v44 = vpack.c.b16 %v42, %v41
  %vm47 = vcmask 261120
  %v49 = vsel %vm47, %v30, 0
  %51 = vmatprep.subr.bf16.mxu0 0
  %52 = vmatpush1.bf16.msra.mxu0 %v43
  %53 = vmatprep.subr.bf16.mxu0 0
  %54 = vmatpush1.bf16.msra.mxu0 %v44
  %55 = vmatprep.subr.bf16.mxu0 0
  %56 = vmatpush1.bf16.msra.mxu0 0
  %57 = vmatprep.subr.bf16.mxu0 0
  %58 = vmatpush1.bf16.msra.mxu0 0
  %59 = vmatprep.subr.bf16.mxu0 0
  %60 = vmatpush1.bf16.msra.mxu0 0
  %61 = vmatprep.subr.bf16.mxu0 0
  %62 = vmatpush1.bf16.msra.mxu0 0
  %63 = vmatprep.subr.bf16.mxu0 0
  %64 = vmatpush1.bf16.msra.mxu0 0
  %65 = vmatprep.subr.bf16.mxu0 0
  %66 = vmatpush1.bf16.msra.mxu0 0
  %67 = vmatprep.subr.bf16.mxu0 0
  %68 = vmatpush1.bf16.msra.mxu0 0
  %69 = vmatprep.subr.bf16.mxu0 0
  %70 = vmatpush1.bf16.msra.mxu0 0
  %71 = vmatprep.subr.bf16.mxu0 0
  %72 = vmatpush1.bf16.msra.mxu0 0
  %73 = vmatprep.subr.bf16.mxu0 0
  %74 = vmatpush1.bf16.msra.mxu0 0
  %75 = vmatprep.subr.bf16.mxu0 0
  %76 = vmatpush1.bf16.msra.mxu0 0
  %77 = vmatprep.subr.bf16.mxu0 0
  %78 = vmatpush1.bf16.msra.mxu0 0
  %79 = vmatprep.subr.bf16.mxu0 0
  %80 = vmatpush1.bf16.msra.mxu0 0
  %81 = vmatprep.subr.bf16.mxu0 0
  %82 = vmatpush1.bf16.msra.mxu0 0
  %83 = vmatprep.mubr.bf16.mxu0 0
  %84 = vmatmul.mubr.bf16.gmra.mrb[0].mxu0 %v49
  %v85 = vpop.f32.mrb[0].mxu0
  %v86 = vadd.f32 0.0, %v85
  %v87 = vpop.f32.mrb[0].mxu0
  %v88 = vpop.f32.mrb[0].mxu0
  %v89 = vadd.f32 0.0, %v88
  %v90 = vpop.f32.mrb[0].mxu0
  %91 = vdwg.mxu0
  %v92 = vld [vmem:[%s1] sm:$0xff]
  %v93 = vld [vmem:[%s1 + $0x8] sm:$0xff]
  %v94 = vpack.c.bf16 %v93, %v92
  %v95 = vld [vmem:[%s4] sm:$0xf]
  %v96 = vld [vmem:[%s4 + $0x4] sm:$0x3]
  %v99 = vunpack.c.l.b16 %v95
  %v100 = vunpack.c.l.b16 %v96
  %v101 = vpack.c.b16 %v100, %v99
  %vm102 = vcmask 97280
  %v104 = vsel %vm102, %v94, 0
  %vm106 = vcmask 1045504
  %v108 = vsel %vm106, %v101, 0
  %110 = vmatprep.subr.bf16.mxu0 0
  %111 = vmatpush1.bf16.msra.mxu0 %v108
  %112 = vmatprep.subr.bf16.mxu0 0
  %113 = vmatpush1.bf16.msra.mxu0 0
  %114 = vmatprep.subr.bf16.mxu0 0
  %115 = vmatpush1.bf16.msra.mxu0 0
  %116 = vmatprep.subr.bf16.mxu0 0
  %117 = vmatpush1.bf16.msra.mxu0 0
  %118 = vmatprep.subr.bf16.mxu0 0
  %119 = vmatpush1.bf16.msra.mxu0 0
  %120 = vmatprep.subr.bf16.mxu0 0
  %121 = vmatpush1.bf16.msra.mxu0 0
  %122 = vmatprep.subr.bf16.mxu0 0
  %123 = vmatpush1.bf16.msra.mxu0 0
  %124 = vmatprep.subr.bf16.mxu0 0
  %125 = vmatpush1.bf16.msra.mxu0 0
  %126 = vmatprep.subr.bf16.mxu0 0
  %127 = vmatpush1.bf16.msra.mxu0 0
  %128 = vmatprep.subr.bf16.mxu0 0
  %129 = vmatpush1.bf16.msra.mxu0 0
  %130 = vmatprep.subr.bf16.mxu0 0
  %131 = vmatpush1.bf16.msra.mxu0 0
  %132 = vmatprep.subr.bf16.mxu0 0
  %133 = vmatpush1.bf16.msra.mxu0 0
  %134 = vmatprep.subr.bf16.mxu0 0
  %135 = vmatpush1.bf16.msra.mxu0 0
  %136 = vmatprep.subr.bf16.mxu0 0
  %137 = vmatpush1.bf16.msra.mxu0 0
  %138 = vmatprep.subr.bf16.mxu0 0
  %139 = vmatpush1.bf16.msra.mxu0 0
  %140 = vmatprep.subr.bf16.mxu0 0
  %141 = vmatpush1.bf16.msra.mxu0 0
  %142 = vmatprep.mubr.bf16.mxu0 0
  %143 = vmatmul.mubr.bf16.gmra.mrb[0].mxu0 %v104
  %v144 = vpop.f32.mrb[0].mxu0
  %v145 = vadd.f32 0.0, %v144
  %v146 = vpop.f32.mrb[0].mxu0
  %v147 = vpop.f32.mrb[0].mxu0
  %v148 = vadd.f32 0.0, %v147
  %v149 = vpop.f32.mrb[0].mxu0
  %150 = vdwg.mxu0
  %v151 = vld [vmem:[%s2] sm:$0xff]
  %v152 = vld [vmem:[%s2 + $0x8] sm:$0xff]
  %v153 = vpack.c.bf16 %v152, %v151
  %v154 = vld [vmem:[%s5] sm:$0xf]
  %v155 = vld [vmem:[%s5 + $0x4] sm:$0xf]
  %v156 = vld [vmem:[%s5 + $0x8] sm:$0x3]
  %v160 = vunpack.c.l.b16 %v154
  %v161 = vunpack.c.l.b16 %v155
  %v162 = vunpack.c.l.b16 %v156
  %v163 = vpack.c.b16 %v161, %v160
  %v164 = vpack.c.b16 %v162, %v162
  %vm166 = vcmask 162816
  %v168 = vsel %vm166, %v153, 0
  %vm170 = vcmask 1041408
  %v172 = vsel %vm170, %v164, 0
  %174 = vmatprep.subr.bf16.mxu0 0
  %175 = vmatpush1.bf16.msra.mxu0 %v163
  %176 = vmatprep.subr.bf16.mxu0 0
  %177 = vmatpush1.bf16.msra.mxu0 %v172
  %178 = vmatprep.subr.bf16.mxu0 0
  %179 = vmatpush1.bf16.msra.mxu0 0
  %180 = vmatprep.subr.bf16.mxu0 0
  %181 = vmatpush1.bf16.msra.mxu0 0
  %182 = vmatprep.subr.bf16.mxu0 0
  %183 = vmatpush1.bf16.msra.mxu0 0
  %184 = vmatprep.subr.bf16.mxu0 0
  %185 = vmatpush1.bf16.msra.mxu0 0
  %186 = vmatprep.subr.bf16.mxu0 0
  %187 = vmatpush1.bf16.msra.mxu0 0
  %188 = vmatprep.subr.bf16.mxu0 0
  %189 = vmatpush1.bf16.msra.mxu0 0
  %190 = vmatprep.subr.bf16.mxu0 0
  %191 = vmatpush1.bf16.msra.mxu0 0
  %192 = vmatprep.subr.bf16.mxu0 0
  %193 = vmatpush1.bf16.msra.mxu0 0
  %194 = vmatprep.subr.bf16.mxu0 0
  %195 = vmatpush1.bf16.msra.mxu0 0
  %196 = vmatprep.subr.bf16.mxu0 0
  %197 = vmatpush1.bf16.msra.mxu0 0
  %198 = vmatprep.subr.bf16.mxu0 0
  %199 = vmatpush1.bf16.msra.mxu0 0
  %200 = vmatprep.subr.bf16.mxu0 0
  %201 = vmatpush1.bf16.msra.mxu0 0
  %202 = vmatprep.subr.bf16.mxu0 0
  %203 = vmatpush1.bf16.msra.mxu0 0
  %204 = vmatprep.subr.bf16.mxu0 0
  %205 = vmatpush1.bf16.msra.mxu0 0
  %206 = vmatprep.mubr.bf16.mxu0 0
  %207 = vmatmul.mubr.bf16.gmra.mrb[0].mxu0 %v168
  %v208 = vpop.f32.mrb[0].mxu0
  %v209 = vadd.f32 0.0, %v208
  %v210 = vpop.f32.mrb[0].mxu0
  %v211 = vpop.f32.mrb[0].mxu0
  %v212 = vadd.f32 0.0, %v211
  %v213 = vpop.f32.mrb[0].mxu0
  %214 = vdwg.mxu0
  %v215 = vpack.c.bf16 %v89, %v86
  %v217 = vunpack.c.l.b16 %v215
  %v218 = vunpack.c.h.b16 %v215
  %v219 = vpack.c.b16 %v217, %v217
  %v220 = vpack.c.b16 %v218, %v218
  %vm223 = vcmask 125952
  %224 = vst.msk [vmem:[%s6] sm:$0xf] %vm223, %v219
  %225 = vst.msk [vmem:[%s6 + $0x4] sm:$0xf] %vm223, %v220
  %v226 = vpack.c.bf16 %v148, %v145
  %v228 = vunpack.c.l.b16 %v226
  %v229 = vunpack.c.h.b16 %v226
  %v230 = vpack.c.b16 %v228, %v228
  %v231 = vpack.c.b16 %v229, %v229
  %234 = vst.msk [vmem:[%s7] sm:$0xf] %vm223, %v230
  %235 = vst.msk [vmem:[%s7 + $0x4] sm:$0xf] %vm223, %v231
  %v236 = vpack.c.bf16 %v212, %v209
  %v238 = vunpack.c.l.b16 %v236
  %v239 = vunpack.c.h.b16 %v236
  %v240 = vpack.c.b16 %v238, %v238
  %v241 = vpack.c.b16 %v239, %v239
  %244 = vst.msk [vmem:[%s8] sm:$0xf] %vm223, %v240
  %245 = vst.msk [vmem:[%s8 + $0x4] sm:$0xf] %vm223, %v241
  %v246 = vmul.f32 %v86, %v86
  %v247 = vmul.f32 %v89, %v89
  %vm248 = vcmask 130048
  %v249 = vsel %vm248, %v246, 0.0
  %v250 = vsel %vm248, %v247, 0.0
  %v251 = vadd.f32 %v249, %v250
  %252 = vadd.xlane.f32.xlu0 %v251
  %v253 = vpop.xlane.xlu0 %252
  %v254 = vrot.slane %v253, 4
  %v255 = vadd.f32 %v253, %v254
  %v256 = vrot.slane %v255, 2
  %v257 = vadd.f32 %v255, %v256
  %v258 = vrot.slane %v257, 1
  %v259 = vadd.f32 %v257, %v258
  %s260 = vtos %v259
  %v261 = vmul.f32 %v145, %v145
  %v262 = vmul.f32 %v148, %v148
  %v263 = vsel %vm248, %v261, 0.0
  %v264 = vsel %vm248, %v262, 0.0
  %v265 = vadd.f32 %v263, %v264
  %266 = vadd.xlane.f32.xlu0 %v265
  %v267 = vpop.xlane.xlu0 %266
  %v268 = vrot.slane %v267, 4
  %v269 = vadd.f32 %v267, %v268
  %v270 = vrot.slane %v269, 2
  %v271 = vadd.f32 %v269, %v270
  %v272 = vrot.slane %v271, 1
  %v273 = vadd.f32 %v271, %v272
  %s274 = vtos %v273
  %v275 = vmul.f32 %v209, %v209
  %v276 = vmul.f32 %v212, %v212
  %v277 = vsel %vm248, %v275, 0.0
  %v278 = vsel %vm248, %v276, 0.0
  %v279 = vadd.f32 %v277, %v278
  %280 = vadd.xlane.f32.xlu0 %v279
  %v281 = vpop.xlane.xlu0 %280
  %v282 = vrot.slane %v281, 4
  %v283 = vadd.f32 %v281, %v282
  %v284 = vrot.slane %v283, 2
  %v285 = vadd.f32 %v283, %v284
  %v286 = vrot.slane %v285, 1
  %v287 = vadd.f32 %v285, %v286
  %s288 = vtos %v287
  %v289 = vlaneseq
  %v290 = vshrl.u32 %v289, 7
  %vm291 = vcmp.eq.s32.totalorder %v290, 0
  %vm292 = vcmp.eq.s32.totalorder %v290, 1
  %v293 = vstv %s274
  %v294 = vstv %s288
  %v295 = vsel %vm292, %v293, %v294
  %v296 = vstv %s260
  %v297 = vsel %vm291, %v296, %v295
  %298 = vst [vmem:[%s9] sm:$0x7] %v297
  // Predicated region
  $region26: #{modality_attention.2} parent=0 // pred_check
    _
  $region27: #{modality_attention.2} parent=0 // pred_check_branch
    %300 = sbr.rel (0) target = $region29
  $region28: #{modality_attention.2} parent=0 // pred_region
    _
  $region29: #{modality_attention.2} parent=0 // pred_fallthru
    _
  // Predicated region
  $region30: #{modality_attention.2} parent=0 // pred_check
    _
  $region31: #{modality_attention.2} parent=0 // pred_check_branch
    %302 = sbr.rel (0) target = $region33
  $region32: #{modality_attention.2} parent=0 // pred_region
    _
  $region33: #{modality_attention.2} parent=0 // pred_fallthru
    _
  // Predicated region
  $region34: #{modality_attention.2} parent=0 // pred_check
    _
  $region35: #{modality_attention.2} parent=0 // pred_check_branch
    %304 = sbr.rel (0) target = $region37
  $region36: #{modality_attention.2} parent=0 // pred_region
    _
  $region37: #{modality_attention.2} parent=0 // pred_fallthru
    _
  // Predicated region
  $region38: #{modality_attention.2} parent=0 // pred_check
    _
  $region39: #{modality_attention.2} parent=0 // pred_check_branch
    %306 = sbr.rel (0) target = $region41
  $region40: #{modality_attention.2} parent=0 // pred_region
    _
  $region41: #{modality_attention.2} parent=0 // pred_fallthru
    _
  // Predicated region
  $region42: #{modality_attention.2} parent=0 // pred_check
    _
  $region43: #{modality_attention.2} parent=0 // pred_check_branch
    %308 = sbr.rel (0) target = $region45
  $region44: #{modality_attention.2} parent=0 // pred_region
    _
  $region45: #{modality_attention.2} parent=0 // pred_fallthru
    _
  // Predicated region
  $region46: #{modality_attention.2} parent=0 // pred_check
    _
  $region47: #{modality_attention.2} parent=0 // pred_check_branch
    %310 = sbr.rel (0) target = $region49
  $region48: #{modality_attention.2} parent=0 // pred_region
    _
  $region49: #{modality_attention.2} parent=0 // pred_fallthru
    _
  // Predicated region
  $region50: #{modality_attention.2} parent=0 // pred_check
    _
  $region51: #{modality_attention.2} parent=0 // pred_check_branch
    %312 = sbr.rel (0) target = $region53
  $region52: #{modality_attention.2} parent=0 // pred_region
    _
  $region53: #{modality_attention.2} parent=0 // pred_fallthru
    _
  // Predicated region
  $region54: #{modality_attention.2} parent=0 // pred_check
    _
  $region55: #{modality_attention.2} parent=0 // pred_check_branch
    %314 = sbr.rel (0) target = $region57
  $region56: #{modality_attention.2} parent=0 // pred_region
    _
  $region57: #{modality_attention.2} parent=0 // pred_fallthru
    _

// kernel: modality_attention.3
$region0: #{modality_attention.3}
  #allocation0 [shape = 'u32[]', space=smem, size = 0x4, offset = 0x4, fixed_abs, tag = 'smem constant byte address 0x4 - core index']
  #allocation1 [shape = 'u32[144,128]{1,0:T(1,128)}', space=vmem, size = 0x12000, scoped, tag = 'internal scratch']
  %s0 = inlined_call_operand.vmem [shape: f32[5], index: 0, kind: input, shape index: {}]
  %s1 = inlined_call_operand.vmem [shape: f32[2,8,32], index: 1, kind: input, shape index: {}]
  %s2 = inlined_call_operand.vmem [shape: bf16[2,8,16], index: 2, kind: input, shape index: {}]
  %s3 = inlined_call_operand.vmem [shape: bf16[2,8,16], index: 3, kind: input, shape index: {}]
  %s4 = inlined_call_operand.vmem [shape: bf16[2,8,16], index: 4, kind: input, shape index: {}]
  %s5 = inlined_call_operand.vmem [shape: f32[2,1,8], index: 5, kind: input, shape index: {}]
  %s6 = inlined_call_operand.vmem [shape: f32[2,8,1], index: 6, kind: input, shape index: {}]
  %s7 = inlined_call_operand.vmem [shape: bf16[32,32], index: 7, kind: input, shape index: {}]
  %s8 = inlined_call_operand.vmem [shape: f32[1,32], index: 8, kind: input, shape index: {}]
  %s9 = inlined_call_operand.vmem [shape: f32[1,32], index: 9, kind: input, shape index: {}]
  %s10 = inlined_call_operand.vmem [shape: f32[1,32], index: 10, kind: input, shape index: {}]
  %s11 = inlined_call_operand.hbm [shape: f32[2,8,32], index: 11, kind: output, shape index: {0}]
  %s12 = inlined_call_operand.hbm [shape: f32[2,8,8], index: 12, kind: output, shape index: {1}]
  %s13 = inlined_call_operand.hbm [shape: f32[2,8,8], index: 13, kind: output, shape index: {2}]
  %14 = xla_tuple %s11, %s12, %s13
  %s15 = sld [smem:[#allocation0]]
  $region74: #{modality_attention.3} parent=0
    _
  %s17 = ssub.s32 1, %s15
  %s18 = scalar_select 0, %s17, %s15
  $region1: #{modality_attention.3} parent=0
    #allocation2 [shape = 'u8[512]{0}', space=smem, size = 0x200, scoped, tag = 'input window, operand 0, single buffered']
    #allocation3 [shape = 's32[1]{0}', space=sflag, size = 0x4, scoped, tag = 'scoped memory for modality_attention.3']
    #allocation4 [shape = 's32[1]{0}', space=sflag, size = 0x4, scoped, tag = 'scoped memory for modality_attention.3']
    #allocation5 [shape = 'u8[8192]{0}', space=vmem, size = 0x2000, scoped, tag = 'output window, operand 0, single buffered']
    #allocation6 [shape = 'u8[8192]{0}', space=vmem, size = 0x2000, scoped, tag = 'output window, operand 1, single buffered']
    #allocation7 [shape = 's32[1]{0}', space=sflag, size = 0x4, scoped, tag = 'scoped memory for modality_attention.3']
    #allocation8 [shape = 'u8[8192]{0}', space=vmem, size = 0x2000, scoped, tag = 'output window, operand 2, single buffered']
    %19 = vsyncpa [#allocation4], 0
    %20 = vsyncpa [#allocation3], 0
    %21 = vsyncpa [#allocation7], 0
    // Predicated region
    $region2: #{modality_attention.3} parent=1 // pred_check
      _
    $region3: #{modality_attention.3} parent=1 // pred_check_branch
      %23 = sbr.rel (0) target = $region5
    $region4: #{modality_attention.3} parent=1 // pred_region
      %s25 = ssub.s32 16, 16
      %26 = vsyncadd [#allocation4], %s25
      %s28 = sshll.u32 %s0, 4
      %s29 = int_to_ptr.vmem [resolvable:$true] %s28
      %31 = dma.vmem_to_smem %s29, 16, [#allocation2], [#allocation4]
    $region5: #{modality_attention.3} parent=1 // pred_fallthru
      _
    // Predicated region
    $region6: #{modality_attention.3} parent=1 // pred_check
      _
    $region7: #{modality_attention.3} parent=1 // pred_check_branch
      %33 = sbr.rel (0) target = $region9
    $region8: #{modality_attention.3} parent=1 // pred_region
      _
    $region9: #{modality_attention.3} parent=1 // pred_fallthru
      _
    // Predicated region
    $region10: #{modality_attention.3} parent=1 // pred_check
      _
    $region11: #{modality_attention.3} parent=1 // pred_check_branch
      %35 = sbr.rel (0) target = $region13
    $region12: #{modality_attention.3} parent=1 // pred_region
      _
    $region13: #{modality_attention.3} parent=1 // pred_fallthru
      _
    // Predicated region
    $region14: #{modality_attention.3} parent=1 // pred_check
      _
    $region15: #{modality_attention.3} parent=1 // pred_check_branch
      %37 = sbr.rel (0) target = $region17
    $region16: #{modality_attention.3} parent=1 // pred_region
      _
    $region17: #{modality_attention.3} parent=1 // pred_fallthru
      _
    // Predicated region
    $region18: #{modality_attention.3} parent=1 // pred_check
      _
    $region19: #{modality_attention.3} parent=1 // pred_check_branch
      %39 = sbr.rel (0) target = $region21
    $region20: #{modality_attention.3} parent=1 // pred_region
      _
    $region21: #{modality_attention.3} parent=1 // pred_fallthru
      _
    // Predicated region
    $region22: #{modality_attention.3} parent=1 // pred_check
      _
    $region23: #{modality_attention.3} parent=1 // pred_check_branch
      %41 = sbr.rel (0) target = $region25
    $region24: #{modality_attention.3} parent=1 // pred_region
      _
    $region25: #{modality_attention.3} parent=1 // pred_fallthru
      _
    // Predicated region
    $region26: #{modality_attention.3} parent=1 // pred_check
      _
    $region27: #{modality_attention.3} parent=1 // pred_check_branch
      %43 = sbr.rel (0) target = $region29
    $region28: #{modality_attention.3} parent=1 // pred_region
      _
    $region29: #{modality_attention.3} parent=1 // pred_fallthru
      _
    // Predicated region
    $region30: #{modality_attention.3} parent=1 // pred_check
      _
    $region31: #{modality_attention.3} parent=1 // pred_check_branch
      %45 = sbr.rel (0) target = $region33
    $region32: #{modality_attention.3} parent=1 // pred_region
      _
    $region33: #{modality_attention.3} parent=1 // pred_fallthru
      _
    // Predicated region
    $region34: #{modality_attention.3} parent=1 // pred_check
      _
    $region35: #{modality_attention.3} parent=1 // pred_check_branch
      %47 = sbr.rel (0) target = $region37
    $region36: #{modality_attention.3} parent=1 // pred_region
      _
    $region37: #{modality_attention.3} parent=1 // pred_fallthru
      _
    // Predicated region
    $region38: #{modality_attention.3} parent=1 // pred_check
      _
    $region39: #{modality_attention.3} parent=1 // pred_check_branch
      %49 = sbr.rel (0) target = $region41
    $region40: #{modality_attention.3} parent=1 // pred_region
      _
    $region41: #{modality_attention.3} parent=1 // pred_fallthru
      _
    // Predicated region
    $region42: #{modality_attention.3} parent=1 // pred_check
      _
    $region43: #{modality_attention.3} parent=1 // pred_check_branch
      %51 = sbr.rel (0) target = $region45
    $region44: #{modality_attention.3} parent=1 // pred_region
      _
    $region45: #{modality_attention.3} parent=1 // pred_fallthru
      _
    // Predicated region
    $region46: #{modality_attention.3} parent=1 // pred_check
      _
    $region47: #{modality_attention.3} parent=1 // pred_check_branch
      %53 = sbr.rel (0) target = $region49
    $region48: #{modality_attention.3} parent=1 // pred_region
      %54 = dma.done [#allocation4], 16
    $region49: #{modality_attention.3} parent=1 // pred_fallthru
      _
    %55 = sfence
    %v57 = vld [vmem:[%s1] sm:$0xff]
    %v58 = vld [vmem:[%s1 + $0x8] sm:$0xff]
    %v59 = vpack.c.bf16 %v57, %v57
    %v60 = vpack.c.bf16 %v58, %v58
    %v61 = vld [vmem:[%s2] sm:$0xf]
    %v62 = vld [vmem:[%s2 + $0x4] sm:$0xf]
    %vm63 = vcmask 130048
    %v65 = vsel %vm63, %v61, 0
    %67 = vmatprep.subr.bf16.mxu0 0
    %68 = vmatpush1.bf16.xpose.msra.mxu0 %v65
    %69 = vmatprep.subr.bf16.mxu0 0
    %70 = vmatpush1.bf16.xpose.msra.mxu0 0
    %71 = vmatprep.subr.bf16.mxu0 0
    %72 = vmatpush1.bf16.xpose.msra.mxu0 0
    %73 = vmatprep.subr.bf16.mxu0 0
    %74 = vmatpush1.bf16.xpose.msra.mxu0 0
    %75 = vmatprep.subr.bf16.mxu0 0
    %76 = vmatpush1.bf16.xpose.msra.mxu0 0
    %77 = vmatprep.subr.bf16.mxu0 0
    %78 = vmatpush1.bf16.xpose.msra.mxu0 0
    %79 = vmatprep.subr.bf16.mxu0 0
    %80 = vmatpush1.bf16.xpose.msra.mxu0 0
    %81 = vmatprep.subr.bf16.mxu0 0
    %82 = vmatpush1.bf16.xpose.msra.mxu0 0
    %83 = vmatprep.subr.bf16.mxu0 0
    %84 = vmatpush1.bf16.xpose.msra.mxu0 0
    %85 = vmatprep.subr.bf16.mxu0 0
    %86 = vmatpush1.bf16.xpose.msra.mxu0 0
    %87 = vmatprep.subr.bf16.mxu0 0
    %88 = vmatpush1.bf16.xpose.msra.mxu0 0
    %89 = vmatprep.subr.bf16.mxu0 0
    %90 = vmatpush1.bf16.xpose.msra.mxu0 0
    %91 = vmatprep.subr.bf16.mxu0 0
    %92 = vmatpush1.bf16.xpose.msra.mxu0 0
    %93 = vmatprep.subr.bf16.mxu0 0
    %94 = vmatpush1.bf16.xpose.msra.mxu0 0
    %95 = vmatprep.subr.bf16.mxu0 0
    %96 = vmatpush1.bf16.xpose.msra.mxu0 0
    %97 = vmatprep.subr.bf16.mxu0 0
    %98 = vmatpush1.bf16.xpose.msra.mxu0 0
    %99 = vmatprep.mubr.bf16.mxu0 0
    %100 = vmatmul.mubr.bf16.gmra.mrb[0].mxu0 %v65
    %v101 = vpop.f32.mrb[0].mxu0
    %v102 = vadd.f32 0.0, %v101
    %v103 = vpop.f32.mrb[0].mxu0
    %v104 = vpop.f32.mrb[0].mxu0
    %v105 = vpop.f32.mrb[0].mxu0
    %106 = vdwg.mxu0
    %v108 = vsel %vm63, %v62, 0
    %110 = vmatprep.subr.bf16.mxu0 0
    %111 = vmatpush1.bf16.xpose.msra.mxu0 %v108
    %112 = vmatprep.subr.bf16.mxu0 0
    %113 = vmatpush1.bf16.xpose.msra.mxu0 0
    %114 = vmatprep.subr.bf16.mxu0 0
    %115 = vmatpush1.bf16.xpose.msra.mxu0 0
    %116 = vmatprep.subr.bf16.mxu0 0
    %117 = vmatpush1.bf16.xpose.msra.mxu0 0
    %118 = vmatprep.subr.bf16.mxu0 0
    %119 = vmatpush1.bf16.xpose.msra.mxu0 0
    %120 = vmatprep.subr.bf16.mxu0 0
    %121 = vmatpush1.bf16.xpose.msra.mxu0 0
    %122 = vmatprep.subr.bf16.mxu0 0
    %123 = vmatpush1.bf16.xpose.msra.mxu0 0
    %124 = vmatprep.subr.bf16.mxu0 0
    %125 = vmatpush1.bf16.xpose.msra.mxu0 0
    %126 = vmatprep.subr.bf16.mxu0 0
    %127 = vmatpush1.bf16.xpose.msra.mxu0 0
    %128 = vmatprep.subr.bf16.mxu0 0
    %129 = vmatpush1.bf16.xpose.msra.mxu0 0
    %130 = vmatprep.subr.bf16.mxu0 0
    %131 = vmatpush1.bf16.xpose.msra.mxu0 0
    %132 = vmatprep.subr.bf16.mxu0 0
    %133 = vmatpush1.bf16.xpose.msra.mxu0 0
    %134 = vmatprep.subr.bf16.mxu0 0
    %135 = vmatpush1.bf16.xpose.msra.mxu0 0
    %136 = vmatprep.subr.bf16.mxu0 0
    %137 = vmatpush1.bf16.xpose.msra.mxu0 0
    %138 = vmatprep.subr.bf16.mxu0 0
    %139 = vmatpush1.bf16.xpose.msra.mxu0 0
    %140 = vmatprep.subr.bf16.mxu0 0
    %141 = vmatpush1.bf16.xpose.msra.mxu0 0
    %142 = vmatprep.mubr.bf16.mxu0 0
    %143 = vmatmul.mubr.bf16.gmra.mrb[0].mxu0 %v108
    %v144 = vpop.f32.mrb[0].mxu0
    %v145 = vadd.f32 0.0, %v144
    %v146 = vpop.f32.mrb[0].mxu0
    %v147 = vpop.f32.mrb[0].mxu0
    %v148 = vpop.f32.mrb[0].mxu0
    %149 = vdwg.mxu0
    %v150 = vmax.f32 %v102, 0.0
    %v151 = vmax.f32 %v145, 0.0
    %s152 = sld [smem:[#allocation2]]
    %v153 = vstv %s152
    %v154 = vmul.f32 %v150, %v153
    %v155 = vmul.f32 %v151, %v153
    %s156 = sld [smem:[#allocation2 + $0x1]]
    %v157 = vstv %s156
    %v158 = vmul.f32 %v154, %v157
    %v159 = vmul.f32 %v155, %v157
    %v160 = vld [vmem:[%s3] sm:$0xf]
    %v161 = vld [vmem:[%s3 + $0x4] sm:$0xf]
    %v163 = vsel %vm63, %v160, 0
    %165 = vmatprep.subr.bf16.mxu0 0
    %166 = vmatpush1.bf16.xpose.msra.mxu0 %v163
    %167 = vmatprep.subr.bf16.mxu0 0
    %168 = vmatpush1.bf16.xpose.msra.mxu0 0
    %169 = vmatprep.subr.bf16.mxu0 0
    %170 = vmatpush1.bf16.xpose.msra.mxu0 0
    %171 = vmatprep.subr.bf16.mxu0 0
    %172 = vmatpush1.bf16.xpose.msra.mxu0 0
    %173 = vmatprep.subr.bf16.mxu0 0
    %174 = vmatpush1.bf16.xpose.msra.mxu0 0
    %175 = vmatprep.subr.bf16.mxu0 0
    %176 = vmatpush1.bf16.xpose.msra.mxu0 0
    %177 = vmatprep.subr.bf16.mxu0 0
    %178 = vmatpush1.bf16.xpose.msra.mxu0 0
    %179 = vmatprep.subr.bf16.mxu0 0
    %180 = vmatpush1.bf16.xpose.msra.mxu0 0
    %181 = vmatprep.subr.bf16.mxu0 0
    %182 = vmatpush1.bf16.xpose.msra.mxu0 0
    %183 = vmatprep.subr.bf16.mxu0 0
    %184 = vmatpush1.bf16.xpose.msra.mxu0 0
    %185 = vmatprep.subr.bf16.mxu0 0
    %186 = vmatpush1.bf16.xpose.msra.mxu0 0
    %187 = vmatprep.subr.bf16.mxu0 0
    %188 = vmatpush1.bf16.xpose.msra.mxu0 0
    %189 = vmatprep.subr.bf16.mxu0 0
    %190 = vmatpush1.bf16.xpose.msra.mxu0 0
    %191 = vmatprep.subr.bf16.mxu0 0
    %192 = vmatpush1.bf16.xpose.msra.mxu0 0
    %193 = vmatprep.subr.bf16.mxu0 0
    %194 = vmatpush1.bf16.xpose.msra.mxu0 0
    %195 = vmatprep.subr.bf16.mxu0 0
    %196 = vmatpush1.bf16.xpose.msra.mxu0 0
    %197 = vmatprep.mubr.bf16.mxu0 0
    %198 = vmatmul.mubr.bf16.gmra.mrb[0].mxu0 %v163
    %v199 = vpop.f32.mrb[0].mxu0
    %v200 = vadd.f32 0.0, %v199
    %v201 = vpop.f32.mrb[0].mxu0
    %v202 = vpop.f32.mrb[0].mxu0
    %v203 = vpop.f32.mrb[0].mxu0
    %204 = vdwg.mxu0
    %v206 = vsel %vm63, %v161, 0
    %208 = vmatprep.subr.bf16.mxu0 0
    %209 = vmatpush1.bf16.xpose.msra.mxu0 %v206
    %210 = vmatprep.subr.bf16.mxu0 0
    %211 = vmatpush1.bf16.xpose.msra.mxu0 0
    %212 = vmatprep.subr.bf16.mxu0 0
    %213 = vmatpush1.bf16.xpose.msra.mxu0 0
    %214 = vmatprep.subr.bf16.mxu0 0
    %215 = vmatpush1.bf16.xpose.msra.mxu0 0
    %216 = vmatprep.subr.bf16.mxu0 0
    %217 = vmatpush1.bf16.xpose.msra.mxu0 0
    %218 = vmatprep.subr.bf16.mxu0 0
    %219 = vmatpush1.bf16.xpose.msra.mxu0 0
    %220 = vmatprep.subr.bf16.mxu0 0
    %221 = vmatpush1.bf16.xpose.msra.mxu0 0
    %222 = vmatprep.subr.bf16.mxu0 0
    %223 = vmatpush1.bf16.xpose.msra.mxu0 0
    %224 = vmatprep.subr.bf16.mxu0 0
    %225 = vmatpush1.bf16.xpose.msra.mxu0 0
    %226 = vmatprep.subr.bf16.mxu0 0
    %227 = vmatpush1.bf16.xpose.msra.mxu0 0
    %228 = vmatprep.subr.bf16.mxu0 0
    %229 = vmatpush1.bf16.xpose.msra.mxu0 0
    %230 = vmatprep.subr.bf16.mxu0 0
    %231 = vmatpush1.bf16.xpose.msra.mxu0 0
    %232 = vmatprep.subr.bf16.mxu0 0
    %233 = vmatpush1.bf16.xpose.msra.mxu0 0
    %234 = vmatprep.subr.bf16.mxu0 0
    %235 = vmatpush1.bf16.xpose.msra.mxu0 0
    %236 = vmatprep.subr.bf16.mxu0 0
    %237 = vmatpush1.bf16.xpose.msra.mxu0 0
    %238 = vmatprep.subr.bf16.mxu0 0
    %239 = vmatpush1.bf16.xpose.msra.mxu0 0
    %240 = vmatprep.mubr.bf16.mxu0 0
    %241 = vmatmul.mubr.bf16.gmra.mrb[0].mxu0 %v206
    %v242 = vpop.f32.mrb[0].mxu0
    %v243 = vadd.f32 0.0, %v242
    %v244 = vpop.f32.mrb[0].mxu0
    %v245 = vpop.f32.mrb[0].mxu0
    %v246 = vpop.f32.mrb[0].mxu0
    %247 = vdwg.mxu0
    %v248 = vmax.f32 %v200, 0.0
    %v249 = vmax.f32 %v243, 0.0
    %s250 = sld [smem:[#allocation2 + $0x2]]
    %v251 = vstv %s250
    %v252 = vmul.f32 %v248, %v251
    %v253 = vmul.f32 %v249, %v251
    %v254 = vadd.f32 %v158, %v252
    %v255 = vadd.f32 %v159, %v253
    %v256 = vld [vmem:[%s4] sm:$0xf]
    %v257 = vld [vmem:[%s4 + $0x4] sm:$0xf]
    %v259 = vsel %vm63, %v256, 0
    %261 = vmatprep.subr.bf16.mxu0 0
    %262 = vmatpush1.bf16.xpose.msra.mxu0 %v259
    %263 = vmatprep.subr.bf16.mxu0 0
    %264 = vmatpush1.bf16.xpose.msra.mxu0 0
    %265 = vmatprep.subr.bf16.mxu0 0
    %266 = vmatpush1.bf16.xpose.msra.mxu0 0
    %267 = vmatprep.subr.bf16.mxu0 0
    %268 = vmatpush1.bf16.xpose.msra.mxu0 0
    %269 = vmatprep.subr.bf16.mxu0 0
    %270 = vmatpush1.bf16.xpose.msra.mxu0 0
    %271 = vmatprep.subr.bf16.mxu0 0
    %272 = vmatpush1.bf16.xpose.msra.mxu0 0
    %273 = vmatprep.subr.bf16.mxu0 0
    %274 = vmatpush1.bf16.xpose.msra.mxu0 0
    %275 = vmatprep.subr.bf16.mxu0 0
    %276 = vmatpush1.bf16.xpose.msra.mxu0 0
    %277 = vmatprep.subr.bf16.mxu0 0
    %278 = vmatpush1.bf16.xpose.msra.mxu0 0
    %279 = vmatprep.subr.bf16.mxu0 0
    %280 = vmatpush1.bf16.xpose.msra.mxu0 0
    %281 = vmatprep.subr.bf16.mxu0 0
    %282 = vmatpush1.bf16.xpose.msra.mxu0 0
    %283 = vmatprep.subr.bf16.mxu0 0
    %284 = vmatpush1.bf16.xpose.msra.mxu0 0
    %285 = vmatprep.subr.bf16.mxu0 0
    %286 = vmatpush1.bf16.xpose.msra.mxu0 0
    %287 = vmatprep.subr.bf16.mxu0 0
    %288 = vmatpush1.bf16.xpose.msra.mxu0 0
    %289 = vmatprep.subr.bf16.mxu0 0
    %290 = vmatpush1.bf16.xpose.msra.mxu0 0
    %291 = vmatprep.subr.bf16.mxu0 0
    %292 = vmatpush1.bf16.xpose.msra.mxu0 0
    %293 = vmatprep.mubr.bf16.mxu0 0
    %294 = vmatmul.mubr.bf16.gmra.mrb[0].mxu0 %v259
    %v295 = vpop.f32.mrb[0].mxu0
    %v296 = vadd.f32 0.0, %v295
    %v297 = vpop.f32.mrb[0].mxu0
    %v298 = vpop.f32.mrb[0].mxu0
    %v299 = vpop.f32.mrb[0].mxu0
    %300 = vdwg.mxu0
    %v302 = vsel %vm63, %v257, 0
    %304 = vmatprep.subr.bf16.mxu0 0
    %305 = vmatpush1.bf16.xpose.msra.mxu0 %v302
    %306 = vmatprep.subr.bf16.mxu0 0
    %307 = vmatpush1.bf16.xpose.msra.mxu0 0
    %308 = vmatprep.subr.bf16.mxu0 0
    %309 = vmatpush1.bf16.xpose.msra.mxu0 0
    %310 = vmatprep.subr.bf16.mxu0 0
    %311 = vmatpush1.bf16.xpose.msra.mxu0 0
    %312 = vmatprep.subr.bf16.mxu0 0
    %313 = vmatpush1.bf16.xpose.msra.mxu0 0
    %314 = vmatprep.subr.bf16.mxu0 0
    %315 = vmatpush1.bf16.xpose.msra.mxu0 0
    %316 = vmatprep.subr.bf16.mxu0 0
    %317 = vmatpush1.bf16.xpose.msra.mxu0 0
    %318 = vmatprep.subr.bf16.mxu0 0
    %319 = vmatpush1.bf16.xpose.msra.mxu0 0
    %320 = vmatprep.subr.bf16.mxu0 0
    %321 = vmatpush1.bf16.xpose.msra.mxu0 0
    %322 = vmatprep.subr.bf16.mxu0 0
    %323 = vmatpush1.bf16.xpose.msra.mxu0 0
    %324 = vmatprep.subr.bf16.mxu0 0
    %325 = vmatpush1.bf16.xpose.msra.mxu0 0
    %326 = vmatprep.subr.bf16.mxu0 0
    %327 = vmatpush1.bf16.xpose.msra.mxu0 0
    %328 = vmatprep.subr.bf16.mxu0 0
    %329 = vmatpush1.bf16.xpose.msra.mxu0 0
    %330 = vmatprep.subr.bf16.mxu0 0
    %331 = vmatpush1.bf16.xpose.msra.mxu0 0
    %332 = vmatprep.subr.bf16.mxu0 0
    %333 = vmatpush1.bf16.xpose.msra.mxu0 0
    %334 = vmatprep.subr.bf16.mxu0 0
    %335 = vmatpush1.bf16.xpose.msra.mxu0 0
    %336 = vmatprep.mubr.bf16.mxu0 0
    %337 = vmatmul.mubr.bf16.gmra.mrb[0].mxu0 %v302
    %v338 = vpop.f32.mrb[0].mxu0
    %v339 = vadd.f32 0.0, %v338
    %v340 = vpop.f32.mrb[0].mxu0
    %v341 = vpop.f32.mrb[0].mxu0
    %v342 = vpop.f32.mrb[0].mxu0
    %343 = vdwg.mxu0
    %v344 = vmax.f32 %v296, 0.0
    %v345 = vmax.f32 %v339, 0.0
    %s346 = sld [smem:[#allocation2 + $0x3]]
    %v347 = vstv %s346
    %v348 = vmul.f32 %v344, %v347
    %v349 = vmul.f32 %v345, %v347
    %v350 = vadd.f32 %v254, %v348
    %v351 = vadd.f32 %v255, %v349
    %s352 = sld [smem:[#allocation2 + $0x4]]
    %v353 = vstv %s352
    %v354 = vadd.f32 %v350, %v353
    %v355 = vadd.f32 %v351, %v353
    %vm356 = vcmask 64512
    %357 = vst.msk [vmem:[#allocation6] sm:$0xff] %vm356, %v154
    %358 = vst.msk [vmem:[#allocation6 + $0x8] sm:$0xff] %vm356, %v155
    %v359 = vmax.f32 %v354, 0.0
    %v360 = vmax.f32 %v355, 0.0
    %361 = vst.msk [vmem:[#allocation8] sm:$0xff] %vm356, %v359
    %362 = vst.msk [vmem:[#allocation8 + $0x8] sm:$0xff] %vm356, %v360
    %v363 = vld [vmem:[%s5] sm:$0x1]
    %v364 = vld [vmem:[%s5 + $0x1] sm:$0x1]
    %v365 = vld [vmem:[%s6] sm:$0xff]
    %v366 = vld [vmem:[%s6 + $0x8] sm:$0xff]
    %v369 = vlaneseq
    %v370 = vshrl.u32 %v369, 7
    %v371 = vsub.s32 0, %v370
    %v372 = vrot.slane %v363, %v371
    %v373 = vlaneseq
    %v374 = vshrl.u32 %v373, 7
    %v375 = vsub.s32 0, %v374
    %v376 = vrot.slane %v364, %v375
    %380 = vset.pattern.permute.xlu0 0
    %381 = vperm.xlu0 %380, %v365
    %v382 = vpop.permute.xlu0 %381
    %385 = vset.pattern.permute.xlu0 0
    %386 = vperm.xlu0 %385, %v366
    %v387 = vpop.permute.xlu0 %386
    %v389 = vmin.f32 %v372, %v382
    %v390 = vmin.f32 %v376, %v387
    %v391 = vadd.f32 %v354, %v389
    %v392 = vadd.f32 %v355, %v390
    %v393 = vsel %vm356, %v391, -inf
    %394 = vmax.xlane.f32.xlu0 %v393
    %v395 = vpop.xlane.xlu0 %394
    %v396 = vsel %vm356, %v392, -inf
    %397 = vmax.xlane.f32.xlu0 %v396
    %v398 = vpop.xlane.xlu0 %397
    %v399 = vsub.f32 %v391, %v395
    %v400 = vsub.f32 %v392, %v398
    %v401 = vmul.f32 %v399, 1.442695
    %v402 = vpow.pop %v401
    %v403 = vmul.f32 %v400, 1.442695
    %v404 = vpow.pop %v403
    %v405 = vsel %vm356, %v402, 0.0
    %406 = vadd.xlane.f32.xlu0 %v405
    %v407 = vpop.xlane.xlu0 %406
    %v408 = vsel %vm356, %v404, 0.0
    %409 = vadd.xlane.f32.xlu0 %v408
    %v410 = vpop.xlane.xlu0 %409
    %v411 = vrcp.pop %v407
    %v412 = vrcp.pop %v410
    %v413 = vpack.c.bf16 %v402, %v402
    %v414 = vpack.c.bf16 %v404, %v404
    %v416 = vsel %vm356, %v413, 0
    %vm418 = vcmask 1043456
    %v420 = vsel %vm418, %v59, 0
    %422 = vmatprep.subr.bf16.mxu0 0
    %423 = vmatpush1.bf16.msra.mxu0 %v420
    %424 = vmatprep.subr.bf16.mxu0 0
    %425 = vmatpush1.bf16.msra.mxu0 0
    %426 = vmatprep.subr.bf16.mxu0 0
    %427 = vmatpush1.bf16.msra.mxu0 0
    %428 = vmatprep.subr.bf16.mxu0 0
    %429 = vmatpush1.bf16.msra.mxu0 0
    %430 = vmatprep.subr.bf16.mxu0 0
    %431 = vmatpush1.bf16.msra.mxu0 0
    %432 = vmatprep.subr.bf16.mxu0 0
    %433 = vmatpush1.bf16.msra.mxu0 0
    %434 = vmatprep.subr.bf16.mxu0 0
    %435 = vmatpush1.bf16.msra.mxu0 0
    %436 = vmatprep.subr.bf16.mxu0 0
    %437 = vmatpush1.bf16.msra.mxu0 0
    %438 = vmatprep.subr.bf16.mxu0 0
    %439 = vmatpush1.bf16.msra.mxu0 0
    %440 = vmatprep.subr.bf16.mxu0 0
    %441 = vmatpush1.bf16.msra.mxu0 0
    %442 = vmatprep.subr.bf16.mxu0 0
    %443 = vmatpush1.bf16.msra.mxu0 0
    %444 = vmatprep.subr.bf16.mxu0 0
    %445 = vmatpush1.bf16.msra.mxu0 0
    %446 = vmatprep.subr.bf16.mxu0 0
    %447 = vmatpush1.bf16.msra.mxu0 0
    %448 = vmatprep.subr.bf16.mxu0 0
    %449 = vmatpush1.bf16.msra.mxu0 0
    %450 = vmatprep.subr.bf16.mxu0 0
    %451 = vmatpush1.bf16.msra.mxu0 0
    %452 = vmatprep.subr.bf16.mxu0 0
    %453 = vmatpush1.bf16.msra.mxu0 0
    %454 = vmatprep.mubr.bf16.mxu0 0
    %455 = vmatmul.mubr.bf16.gmra.mrb[0].mxu0 %v416
    %v456 = vpop.f32.mrb[0].mxu0
    %v457 = vadd.f32 0.0, %v456
    %v458 = vpop.f32.mrb[0].mxu0
    %v459 = vpop.f32.mrb[0].mxu0
    %v460 = vpop.f32.mrb[0].mxu0
    %461 = vdwg.mxu0
    %v463 = vsel %vm356, %v414, 0
    %v466 = vsel %vm418, %v60, 0
    %468 = vmatprep.subr.bf16.mxu0 0
    %469 = vmatpush1.bf16.msra.mxu0 %v466
    %470 = vmatprep.subr.bf16.mxu0 0
    %471 = vmatpush1.bf16.msra.mxu0 0
    %472 = vmatprep.subr.bf16.mxu0 0
    %473 = vmatpush1.bf16.msra.mxu0 0
    %474 = vmatprep.subr.bf16.mxu0 0
    %475 = vmatpush1.bf16.msra.mxu0 0
    %476 = vmatprep.subr.bf16.mxu0 0
    %477 = vmatpush1.bf16.msra.mxu0 0
    %478 = vmatprep.subr.bf16.mxu0 0
    %479 = vmatpush1.bf16.msra.mxu0 0
    %480 = vmatprep.subr.bf16.mxu0 0
    %481 = vmatpush1.bf16.msra.mxu0 0
    %482 = vmatprep.subr.bf16.mxu0 0
    %483 = vmatpush1.bf16.msra.mxu0 0
    %484 = vmatprep.subr.bf16.mxu0 0
    %485 = vmatpush1.bf16.msra.mxu0 0
    %486 = vmatprep.subr.bf16.mxu0 0
    %487 = vmatpush1.bf16.msra.mxu0 0
    %488 = vmatprep.subr.bf16.mxu0 0
    %489 = vmatpush1.bf16.msra.mxu0 0
    %490 = vmatprep.subr.bf16.mxu0 0
    %491 = vmatpush1.bf16.msra.mxu0 0
    %492 = vmatprep.subr.bf16.mxu0 0
    %493 = vmatpush1.bf16.msra.mxu0 0
    %494 = vmatprep.subr.bf16.mxu0 0
    %495 = vmatpush1.bf16.msra.mxu0 0
    %496 = vmatprep.subr.bf16.mxu0 0
    %497 = vmatpush1.bf16.msra.mxu0 0
    %498 = vmatprep.subr.bf16.mxu0 0
    %499 = vmatpush1.bf16.msra.mxu0 0
    %500 = vmatprep.mubr.bf16.mxu0 0
    %501 = vmatmul.mubr.bf16.gmra.mrb[0].mxu0 %v463
    %v502 = vpop.f32.mrb[0].mxu0
    %v503 = vadd.f32 0.0, %v502
    %v504 = vpop.f32.mrb[0].mxu0
    %v505 = vpop.f32.mrb[0].mxu0
    %v506 = vpop.f32.mrb[0].mxu0
    %507 = vdwg.mxu0
    %v508 = vmul.f32 %v457, %v411
    %v509 = vmul.f32 %v503, %v412
    %v510 = vadd.f32 %v508, %v57
    %v511 = vadd.f32 %v509, %v58
    %v512 = vpack.c.bf16 %v511, %v510
    %v513 = vld [vmem:[%s7] sm:$0xf]
    %v514 = vld [vmem:[%s7 + $0x4] sm:$0xf]
    %v515 = vld [vmem:[%s7 + $0x8] sm:$0xf]
    %v516 = vld [vmem:[%s7 + $0xc] sm:$0xf]
    %v517 = vld [vmem:[%s8] sm:$0x1]
    %v519 = vlaneseq
    %v520 = vshrl.u32 %v519, 7
    %v521 = vsub.s32 0, %v520
    %v522 = vrot.slane %v517, %v521
    %v528 = vunpack.c.l.b16 %v513
    %v529 = vunpack.c.l.b16 %v514
    %v530 = vunpack.c.l.b16 %v515
    %v531 = vunpack.c.l.b16 %v516
    %v532 = vpack.c.b16 %v529, %v528
    %v533 = vpack.c.b16 %v531, %v530
    %vm536 = vcmask 261120
    %v538 = vsel %vm536, %v512, 0
    %540 = vmatprep.subr.bf16.mxu0 0
    %541 = vmatpush1.bf16.msra.mxu0 %v532
    %542 = vmatprep.subr.bf16.mxu0 0
    %543 = vmatpush1.bf16.msra.mxu0 %v533
    %544 = vmatprep.subr.bf16.mxu0 0
    %545 = vmatpush1.bf16.msra.mxu0 0
    %546 = vmatprep.subr.bf16.mxu0 0
    %547 = vmatpush1.bf16.msra.mxu0 0
    %548 = vmatprep.subr.bf16.mxu0 0
    %549 = vmatpush1.bf16.msra.mxu0 0
    %550 = vmatprep.subr.bf16.mxu0 0
    %551 = vmatpush1.bf16.msra.mxu0 0
    %552 = vmatprep.subr.bf16.mxu0 0
    %553 = vmatpush1.bf16.msra.mxu0 0
    %554 = vmatprep.subr.bf16.mxu0 0
    %555 = vmatpush1.bf16.msra.mxu0 0
    %556 = vmatprep.subr.bf16.mxu0 0
    %557 = vmatpush1.bf16.msra.mxu0 0
    %558 = vmatprep.subr.bf16.mxu0 0
    %559 = vmatpush1.bf16.msra.mxu0 0
    %560 = vmatprep.subr.bf16.mxu0 0
    %561 = vmatpush1.bf16.msra.mxu0 0
    %562 = vmatprep.subr.bf16.mxu0 0
    %563 = vmatpush1.bf16.msra.mxu0 0
    %564 = vmatprep.subr.bf16.mxu0 0
    %565 = vmatpush1.bf16.msra.mxu0 0
    %566 = vmatprep.subr.bf16.mxu0 0
    %567 = vmatpush1.bf16.msra.mxu0 0
    %568 = vmatprep.subr.bf16.mxu0 0
    %569 = vmatpush1.bf16.msra.mxu0 0
    %570 = vmatprep.subr.bf16.mxu0 0
    %571 = vmatpush1.bf16.msra.mxu0 0
    %572 = vmatprep.mubr.bf16.mxu0 0
    %573 = vmatmul.mubr.bf16.gmra.mrb[0].mxu0 %v538
    %v574 = vpop.f32.mrb[0].mxu0
    %v575 = vadd.f32 %v522, %v574
    %v576 = vpop.f32.mrb[0].mxu0
    %v577 = vpop.f32.mrb[0].mxu0
    %v578 = vadd.f32 %v522, %v577
    %v579 = vpop.f32.mrb[0].mxu0
    %580 = vdwg.mxu0
    %v581 = vsel %vm536, %v575, 0.0
    %582 = vadd.xlane.f32.xlu0 %v581
    %v583 = vpop.xlane.xlu0 %582
    %v584 = vsel %vm536, %v578, 0.0
    %585 = vadd.xlane.f32.xlu0 %v584
    %v586 = vpop.xlane.xlu0 %585
    %v587 = vrcp.pop 32.0
    %v588 = vmul.f32 %v583, %v587
    %v589 = vmul.f32 %v586, %v587
    %v590 = vsub.f32 %v575, %v588
    %v591 = vsub.f32 %v578, %v589
    %v592 = vmul.f32 %v590, %v590
    %v593 = vmul.f32 %v591, %v591
    %v594 = vsel %vm536, %v592, 0.0
    %595 = vadd.xlane.f32.xlu0 %v594
    %v596 = vpop.xlane.xlu0 %595
    %v597 = vsel %vm536, %v593, 0.0
    %598 = vadd.xlane.f32.xlu0 %v597
    %v599 = vpop.xlane.xlu0 %598
    %v600 = vmul.f32 %v596, %v587
    %v601 = vmul.f32 %v599, %v587
    %v602 = vadd.f32 %v600, 1e-05
    %v603 = vadd.f32 %v601, 1e-05
    %v604 = vrsqrt.pop %v602
    %v605 = vrsqrt.pop %v603
    %v606 = vmul.f32 %v590, %v604
    %v607 = vmul.f32 %v591, %v605
    %v608 = vld [vmem:[%s9] sm:$0x1]
    %v610 = vlaneseq
    %v611 = vshrl.u32 %v610, 7
    %v612 = vsub.s32 0, %v611
    %v613 = vrot.slane %v608, %v612
    %v615 = vmul.f32 %v606, %v613
    %v616 = vmul.f32 %v607, %v613
    %v617 = vld [vmem:[%s10] sm:$0x1]
    %v619 = vlaneseq
    %v620 = vshrl.u32 %v619, 7
    %v621 = vsub.s32 0, %v620
    %v622 = vrot.slane %v617, %v621
    %v624 = vadd.f32 %v615, %v622
    %v625 = vadd.f32 %v616, %v622
    %626 = vst.msk [vmem:[#allocation5] sm:$0xff] %vm536, %v624
    %627 = vst.msk [vmem:[#allocation5 + $0x8] sm:$0xff] %vm536, %v625
    // Predicated region
    $region50: #{modality_attention.3} parent=1 // pred_check
      _
    $region51: #{modality_attention.3} parent=1 // pred_check_branch
      %629 = sbr.rel (0) target = $region53
    $region52: #{modality_attention.3} parent=1 // pred_region
      %s631 = ssub.s32 256, 256
      %632 = vsyncadd [#allocation3], %s631
      %s633 = sshll.u32 [#allocation5], 4
      %s634 = int_to_ptr.vmem [resolvable:$true] %s633
      %639 = dma.vmem_to_hbm [thread:$0]  %s634, 256, %s11, [#allocation3], 128, 128, 8
    $region53: #{modality_attention.3} parent=1 // pred_fallthru
      _
    // Predicated region
    $region54: #{modality_attention.3} parent=1 // pred_check
      _
    $region55: #{modality_attention.3} parent=1 // pred_check_branch
      %641 = sbr.rel (0) target = $region57
    $region56: #{modality_attention.3} parent=1 // pred_region
      %s643 = ssub.s32 256, 256
      %644 = vsyncadd [#allocation7], %s643
      %s645 = sshll.u32 [#allocation6], 4
      %s646 = int_to_ptr.vmem [resolvable:$true] %s645
      %651 = dma.vmem_to_hbm [thread:$0]  %s646, 256, %s12, [#allocation7], 128, 128, 8
    $region57: #{modality_attention.3} parent=1 // pred_fallthru
      _
    // Predicated region
    $region58: #{modality_attention.3} parent=1 // pred_check
      _
    $region59: #{modality_attention.3} parent=1 // pred_check_branch
      %653 = sbr.rel (0) target = $region61
    $region60: #{modality_attention.3} parent=1 // pred_region
      %s655 = ssub.s32 256, 256
      %656 = vsyncadd [#allocation7], %s655
      %s657 = sshll.u32 [#allocation8], 4
      %s658 = int_to_ptr.vmem [resolvable:$true] %s657
      %663 = dma.vmem_to_hbm [thread:$0]  %s658, 256, %s13, [#allocation7], 128, 128, 8
    $region61: #{modality_attention.3} parent=1 // pred_fallthru
      _
    // Predicated region
    $region62: #{modality_attention.3} parent=1 // pred_check
      _
    $region63: #{modality_attention.3} parent=1 // pred_check_branch
      %665 = sbr.rel (0) target = $region65
    $region64: #{modality_attention.3} parent=1 // pred_region
      %666 = dma.done [#allocation3], 256
    $region65: #{modality_attention.3} parent=1 // pred_fallthru
      _
    // Predicated region
    $region66: #{modality_attention.3} parent=1 // pred_check
      _
    $region67: #{modality_attention.3} parent=1 // pred_check_branch
      %668 = sbr.rel (0) target = $region69
    $region68: #{modality_attention.3} parent=1 // pred_region
      %669 = dma.done [#allocation7], 256
    $region69: #{modality_attention.3} parent=1 // pred_fallthru
      _
    // Predicated region
    $region70: #{modality_attention.3} parent=1 // pred_check
      _
    $region71: #{modality_attention.3} parent=1 // pred_check_branch
      %671 = sbr.rel (0) target = $region73
    $region72: #{modality_attention.3} parent=1 // pred_region
      %672 = dma.done [#allocation7], 256
    $region73: #{modality_attention.3} parent=1 // pred_fallthru
      _
    %673 = vsyncpa [#allocation3], 1
    %674 = vsyncpa [#allocation7], 1
    %675 = vsyncpa [#allocation4], 1

</llo_original>
